<compile_context>
chip_gen: v7x
topology: tpu7x:2x2x1
jax: 0.10.0
libtpu: 0.0.40
codegen_flags: <defaults>
</compile_context>

<pallas_src>
import jax
import jax.numpy as jnp
from jax.experimental import pallas as pl
from jax.experimental.pallas import tpu as pltpu


def _gru_seq_kernel(x_ref, h0_ref, wih_ref, whh_ref, bih_ref, bhh_ref,
                    out_ref, xp_ref):
    """x_ref:   (T, H)   embedded tokens (weight dtype: f32 or bf16)
       h0_ref:  (1, H)   initial hidden (f32)
       wih_ref: (H, 3H)  W_ih^T, gate column order [r | z | n]
       whh_ref: (H, 3H)  W_hh^T, gate column order [r | z | n]
       bih_ref: (1, 3H)  b_ih (f32)
       bhh_ref: (1, 3H)  b_hh (f32)
       out_ref: (T, H)   h_1..h_T (f32); VMEM-resident, single HBM writeback
       xp_ref:  (T, 3H)  VMEM scratch: batched input projection (f32)"""
    T, H = out_ref.shape

    # Phase 1: hoisted input projection for all timesteps -> one M=T MXU GEMM.
    xp_ref[...] = (jnp.dot(x_ref[...], wih_ref[...],
                           preferred_element_type=jnp.float32)
                   + bih_ref[...])

    # Phase 2: serial GRU recurrence.  Hidden state is the fori_loop carry
    # (stays in vregs) -- no VMEM store->load roundtrip on the critical path.
    def step(t, h):
        gh = (jnp.dot(h.astype(whh_ref.dtype), whh_ref[...],
                      preferred_element_type=jnp.float32)
              + bhh_ref[...])                                     # (1, 3H)
        gi = xp_ref[pl.ds(t, 1), :]                               # (1, 3H)
        r = jax.nn.sigmoid(gi[:, 0:H] + gh[:, 0:H])
        z = jax.nn.sigmoid(gi[:, H:2 * H] + gh[:, H:2 * H])
        n = jnp.tanh(gi[:, 2 * H:3 * H] + r * gh[:, 2 * H:3 * H])
        h_new = (1.0 - z) * n + z * h
        out_ref[pl.ds(t, 1), :] = h_new
        return h_new

    jax.lax.fori_loop(0, T, step, h0_ref[...], unroll=True)


def encoder_rnn_forward(tokens, hidden, params, *, weight_dtype=jnp.float32):
    """Run the EncoderRNN over `tokens` (scalar or (T,) int32) starting from
    `hidden` of shape (1, 1, H).  Returns (outputs (T, 1, H), hidden (1, 1, H)).
    T == 1 reproduces the PyTorch module's single-step forward exactly."""
    emb = params["embedding"]                                     # (V, H)
    V, H = emb.shape

    tok = jnp.atleast_1d(jnp.asarray(tokens, jnp.int32)).reshape(-1)
    tok = jnp.clip(tok, 0, V - 1)      # OOB guard (PyTorch would raise instead)
    T = int(tok.shape[0])

    # One contiguous (T, H) embedding gather in the wrapper (single XLA gather /
    # single slab DMA) instead of T per-step (1, H) row DMAs inside the kernel.
    x = jnp.take(emb, tok, axis=0).astype(weight_dtype)
    h0 = hidden.reshape(1, H).astype(jnp.float32)
    w_ih_t = params["w_ih_t"].astype(weight_dtype)                # (H, 3H)
    w_hh_t = params["w_hh_t"].astype(weight_dtype)                # (H, 3H)
    b_ih = params["b_ih_row"]                                     # (1, 3H) f32
    b_hh = params["b_hh_row"]                                     # (1, 3H) f32

    vmem = pl.BlockSpec(memory_space=pltpu.MemorySpace.VMEM)
    out = pl.pallas_call(
        _gru_seq_kernel,
        out_shape=jax.ShapeDtypeStruct((T, H), jnp.float32),
        in_specs=[vmem] * 6,
        out_specs=vmem,
        scratch_shapes=[pltpu.VMEM((T, 3 * H), jnp.float32)],
        compiler_params=pltpu.CompilerParams(
            vmem_limit_bytes=32 * 1024 * 1024),
    )(x, h0, w_ih_t, w_hh_t, b_ih, b_hh)

    outputs = out.reshape(T, 1, H)
    hidden_new = out[T - 1:T].reshape(1, 1, H)    # last output row == new hidden
    return outputs, hidden_new


def _reference_forward(tokens, hidden, params):
    """Pure-JAX reference of PyTorch EncoderRNN stepped over the token sequence."""
    H = hidden.shape[-1]
    tok = jnp.atleast_1d(jnp.asarray(tokens, jnp.int32)).reshape(-1)
    emb = params["embedding"]
    w_ih, w_hh = params["w_ih"], params["w_hh"]                   # (3H, H)
    b_ih, b_hh = params["b_ih"], params["b_hh"]                   # (3H,)

    def step(h, t):
        x = emb[t].reshape(1, H)
        gi = x @ w_ih.T + b_ih
        gh = h @ w_hh.T + b_hh
        r = jax.nn.sigmoid(gi[:, :H] + gh[:, :H])
        z = jax.nn.sigmoid(gi[:, H:2 * H] + gh[:, H:2 * H])
        n = jnp.tanh(gi[:, 2 * H:] + r * gh[:, 2 * H:])
        h_new = (1.0 - z) * n + z * h
        return h_new, h_new

    h_last, outs = jax.lax.scan(step, hidden.reshape(1, H), tok)
    T = tok.shape[0]
    return outs.reshape(T, 1, H), h_last.reshape(1, 1, H)


def init_params(key, input_size, hidden_size):
    H = hidden_size
    k_emb, k_wih, k_whh, k_bih, k_bhh = jax.random.split(key, 5)
    bound = 1.0 / (H ** 0.5)
    # nn.Embedding default ~ N(0,1); nn.GRU default ~ U(-1/sqrt(H), 1/sqrt(H)).
    emb = jax.random.normal(k_emb, (input_size, H), jnp.float32)
    w_ih = jax.random.uniform(k_wih, (3 * H, H), jnp.float32, -bound, bound)
    w_hh = jax.random.uniform(k_whh, (3 * H, H), jnp.float32, -bound, bound)
    b_ih = jax.random.uniform(k_bih, (3 * H,), jnp.float32, -bound, bound)
    b_hh = jax.random.uniform(k_bhh, (3 * H,), jnp.float32, -bound, bound)

    # Kernel-side one-time packing: transposed weights (H, 3H) so the MXU dots
    # are plain row-major GEMMs with gate column order [r | z | n].  No zero
    # blocks, no fused W_cat.
    return {
        "embedding": emb,
        "w_ih": w_ih, "w_hh": w_hh, "b_ih": b_ih, "b_hh": b_hh,
        "w_ih_t": jnp.asarray(w_ih.T), "w_hh_t": jnp.asarray(w_hh.T),
        "b_ih_row": b_ih.reshape(1, 3 * H), "b_hh_row": b_hh.reshape(1, 3 * H),
    }


if __name__ == "__main__":
    VOCAB = 64          # input_size (vocab)
    HIDDEN = 128        # hidden_size (lane-aligned)
    SEQ = 8             # sequence length (sublane-aligned output slab)

    key = jax.random.PRNGKey(0)
    params = init_params(key, VOCAB, HIDDEN)

    tokens = jax.random.randint(jax.random.fold_in(key, 1), (SEQ,), 0, VOCAB,
                                dtype=jnp.int32)
    hidden0 = jnp.zeros((1, 1, HIDDEN), jnp.float32)              # EncoderRNN.initHidden()

    ref_out, ref_h = _reference_forward(tokens, hidden0, params)

    # Full-sequence run, f32 weights (exact match vs. reference).
    outputs, h_new = encoder_rnn_forward(tokens, hidden0, params)
    jax.block_until_ready((outputs, h_new))
    assert outputs.shape == (SEQ, 1, HIDDEN) and h_new.shape == (1, 1, HIDDEN)
    assert jnp.allclose(outputs, ref_out, atol=1e-4, rtol=1e-4), "f32 sequence output mismatch"
    assert jnp.allclose(h_new, ref_h, atol=1e-4, rtol=1e-4), "f32 sequence hidden mismatch"

    # Full-sequence run with bf16-stored weights (halved weight DMA/VMEM; gate
    # math and accumulation stay f32) -- checked at bf16-appropriate tolerance.
    out_bf, h_bf = encoder_rnn_forward(tokens, hidden0, params,
                                       weight_dtype=jnp.bfloat16)
    jax.block_until_ready((out_bf, h_bf))
    assert jnp.allclose(out_bf, ref_out, atol=2e-2, rtol=2e-2), "bf16 sequence output mismatch"
    assert jnp.allclose(h_bf, ref_h, atol=2e-2, rtol=2e-2), "bf16 sequence hidden mismatch"

    # Single-step call == original PyTorch forward(input, hidden) semantics.
    out1, h1 = encoder_rnn_forward(tokens[0], hidden0, params)
    ref1_out, ref1_h = _reference_forward(tokens[0], hidden0, params)
    assert out1.shape == (1, 1, HIDDEN) and h1.shape == (1, 1, HIDDEN)
    assert jnp.allclose(out1, ref1_out, atol=1e-4, rtol=1e-4), "single-step output mismatch"
    assert jnp.allclose(h1, ref1_h, atol=1e-4, rtol=1e-4), "single-step hidden mismatch"

    print("KERNEL_OK")
</pallas_src>

<mosaic_0001>
module attributes {stable_mosaic.version = 11 : i64} {
  func.func @_gru_seq_kernel(%arg0: memref<8x128xf32, #tpu.memory_space<vmem>>, %arg1: memref<1x128xf32, #tpu.memory_space<vmem>>, %arg2: memref<128x384xf32, #tpu.memory_space<vmem>>, %arg3: memref<128x384xf32, #tpu.memory_space<vmem>>, %arg4: memref<1x384xf32, #tpu.memory_space<vmem>>, %arg5: memref<1x384xf32, #tpu.memory_space<vmem>>, %arg6: memref<8x128xf32, #tpu.memory_space<vmem>>, %arg7: memref<8x384xf32, #tpu.memory_space<vmem>>) attributes {dimension_semantics = [], scalar_prefetch = 0 : i64, scratch_operands = 1 : i64, tpu.core_type = #tpu.core_type<tc>} {
    %c0 = arith.constant 0 : index
    %c0_0 = arith.constant 0 : index
    %0 = vector.load %arg0[%c0, %c0_0] : memref<8x128xf32, #tpu.memory_space<vmem>>, vector<8x128xf32>
    %c0_1 = arith.constant 0 : index
    %c0_2 = arith.constant 0 : index
    %1 = vector.load %arg2[%c0_1, %c0_2] : memref<128x384xf32, #tpu.memory_space<vmem>>, vector<128x384xf32>
    %cst = arith.constant dense<0.000000e+00> : vector<8x384xf32>
    %2 = tpu.matmul %0, %1, %cst {dimension_numbers = #tpu.dot_dimension_numbers<[1], [0], [0], [1], [0, 0, 1, 1], [], []>} : vector<8x128xf32>, vector<128x384xf32>, vector<8x384xf32> -> vector<8x384xf32>
    %c0_3 = arith.constant 0 : index
    %c0_4 = arith.constant 0 : index
    %3 = vector.load %arg4[%c0_3, %c0_4] : memref<1x384xf32, #tpu.memory_space<vmem>>, vector<1x384xf32>
    %4 = vector.broadcast %3 : vector<1x384xf32> to vector<8x384xf32>
    %5 = arith.addf %2, %4 : vector<8x384xf32>
    %c0_5 = arith.constant 0 : index
    %c0_6 = arith.constant 0 : index
    %6 = vector.load %arg7[%c0_5, %c0_6] : memref<8x384xf32, #tpu.memory_space<vmem>>, vector<8x384xf32>
    tpu.vector_store %arg7[%c0_5, %c0_6], %5 {strides = array<i32>} : memref<8x384xf32, #tpu.memory_space<vmem>>, vector<8x384xf32>,
    %c0_7 = arith.constant 0 : index
    %c0_8 = arith.constant 0 : index
    %7 = vector.load %arg1[%c0_7, %c0_8] : memref<1x128xf32, #tpu.memory_space<vmem>>, vector<1x128xf32>
    %c0_i32 = arith.constant 0 : i32
    %c0_9 = arith.constant 0 : index
    %c0_10 = arith.constant 0 : index
    %8 = vector.load %arg3[%c0_9, %c0_10] : memref<128x384xf32, #tpu.memory_space<vmem>>, vector<128x384xf32>
    %cst_11 = arith.constant dense<0.000000e+00> : vector<1x384xf32>
    %9 = tpu.matmul %7, %8, %cst_11 {dimension_numbers = #tpu.dot_dimension_numbers<[1], [0], [0], [1], [0, 0, 1, 1], [], []>} : vector<1x128xf32>, vector<128x384xf32>, vector<1x384xf32> -> vector<1x384xf32>
    %c0_12 = arith.constant 0 : index
    %c0_13 = arith.constant 0 : index
    %10 = vector.load %arg5[%c0_12, %c0_13] : memref<1x384xf32, #tpu.memory_space<vmem>>, vector<1x384xf32>
    %11 = arith.addf %9, %10 : vector<1x384xf32>
    %12 = arith.index_cast %c0_i32 : i32 to index
    %c0_14 = arith.constant 0 : index
    %13 = vector.load %arg7[%12, %c0_14] : memref<8x384xf32, #tpu.memory_space<vmem>>, vector<1x384xf32>
    %14 = vector.extract_strided_slice %13 {offsets = [0, 0], sizes = [1, 128], strides = [1, 1]} : vector<1x384xf32> to vector<1x128xf32>
    %15 = vector.extract_strided_slice %11 {offsets = [0, 0], sizes = [1, 128], strides = [1, 1]} : vector<1x384xf32> to vector<1x128xf32>
    %16 = arith.addf %14, %15 : vector<1x128xf32>
    %17 = arith.negf %16 : vector<1x128xf32>
    %18 = math.exp %17 : vector<1x128xf32>
    %cst_15 = arith.constant 1.000000e+00 : f32
    %19 = vector.broadcast %cst_15 : f32 to vector<1x128xf32>
    %20 = arith.addf %19, %18 : vector<1x128xf32>
    %21 = arith.divf %19, %20 : vector<1x128xf32>
    %22 = vector.extract_strided_slice %13 {offsets = [0, 128], sizes = [1, 128], strides = [1, 1]} : vector<1x384xf32> to vector<1x128xf32>
    %23 = vector.extract_strided_slice %11 {offsets = [0, 128], sizes = [1, 128], strides = [1, 1]} : vector<1x384xf32> to vector<1x128xf32>
    %24 = arith.addf %22, %23 : vector<1x128xf32>
    %25 = arith.negf %24 : vector<1x128xf32>
    %26 = math.exp %25 : vector<1x128xf32>
    %cst_16 = arith.constant 1.000000e+00 : f32
    %27 = vector.broadcast %cst_16 : f32 to vector<1x128xf32>
    %28 = arith.addf %27, %26 : vector<1x128xf32>
    %29 = arith.divf %27, %28 : vector<1x128xf32>
    %30 = vector.extract_strided_slice %13 {offsets = [0, 256], sizes = [1, 128], strides = [1, 1]} : vector<1x384xf32> to vector<1x128xf32>
    %31 = vector.extract_strided_slice %11 {offsets = [0, 256], sizes = [1, 128], strides = [1, 1]} : vector<1x384xf32> to vector<1x128xf32>
    %32 = arith.mulf %21, %31 : vector<1x128xf32>
    %33 = arith.addf %30, %32 : vector<1x128xf32>
    %34 = math.tanh %33 : vector<1x128xf32>
    %cst_17 = arith.constant 1.000000e+00 : f32
    %35 = vector.broadcast %cst_17 : f32 to vector<1x128xf32>
    %36 = arith.subf %35, %29 : vector<1x128xf32>
    %37 = arith.mulf %36, %34 : vector<1x128xf32>
    %38 = arith.mulf %29, %7 : vector<1x128xf32>
    %39 = arith.addf %37, %38 : vector<1x128xf32>
    %40 = arith.index_cast %c0_i32 : i32 to index
    %c0_18 = arith.constant 0 : index
    %41 = vector.load %arg6[%40, %c0_18] : memref<8x128xf32, #tpu.memory_space<vmem>>, vector<1x128xf32>
    tpu.vector_store %arg6[%40, %c0_18], %39 {strides = array<i32>} : memref<8x128xf32, #tpu.memory_space<vmem>>, vector<1x128xf32>,
    %c1_i32 = arith.constant 1 : i32
    %c0_19 = arith.constant 0 : index
    %c0_20 = arith.constant 0 : index
    %42 = vector.load %arg3[%c0_19, %c0_20] : memref<128x384xf32, #tpu.memory_space<vmem>>, vector<128x384xf32>
    %cst_21 = arith.constant dense<0.000000e+00> : vector<1x384xf32>
    %43 = tpu.matmul %39, %42, %cst_21 {dimension_numbers = #tpu.dot_dimension_numbers<[1], [0], [0], [1], [0, 0, 1, 1], [], []>} : vector<1x128xf32>, vector<128x384xf32>, vector<1x384xf32> -> vector<1x384xf32>
    %c0_22 = arith.constant 0 : index
    %c0_23 = arith.constant 0 : index
    %44 = vector.load %arg5[%c0_22, %c0_23] : memref<1x384xf32, #tpu.memory_space<vmem>>, vector<1x384xf32>
    %45 = arith.addf %43, %44 : vector<1x384xf32>
    %46 = arith.index_cast %c1_i32 : i32 to index
    %c0_24 = arith.constant 0 : index
    %47 = vector.load %arg7[%46, %c0_24] : memref<8x384xf32, #tpu.memory_space<vmem>>, vector<1x384xf32>
    %48 = vector.extract_strided_slice %47 {offsets = [0, 0], sizes = [1, 128], strides = [1, 1]} : vector<1x384xf32> to vector<1x128xf32>
    %49 = vector.extract_strided_slice %45 {offsets = [0, 0], sizes = [1, 128], strides = [1, 1]} : vector<1x384xf32> to vector<1x128xf32>
    %50 = arith.addf %48, %49 : vector<1x128xf32>
    %51 = arith.negf %50 : vector<1x128xf32>
    %52 = math.exp %51 : vector<1x128xf32>
    %cst_25 = arith.constant 1.000000e+00 : f32
    %53 = vector.broadcast %cst_25 : f32 to vector<1x128xf32>
    %54 = arith.addf %53, %52 : vector<1x128xf32>
    %55 = arith.divf %53, %54 : vector<1x128xf32>
    %56 = vector.extract_strided_slice %47 {offsets = [0, 128], sizes = [1, 128], strides = [1, 1]} : vector<1x384xf32> to vector<1x128xf32>
    %57 = vector.extract_strided_slice %45 {offsets = [0, 128], sizes = [1, 128], strides = [1, 1]} : vector<1x384xf32> to vector<1x128xf32>
    %58 = arith.addf %56, %57 : vector<1x128xf32>
    %59 = arith.negf %58 : vector<1x128xf32>
    %60 = math.exp %59 : vector<1x128xf32>
    %cst_26 = arith.constant 1.000000e+00 : f32
    %61 = vector.broadcast %cst_26 : f32 to vector<1x128xf32>
    %62 = arith.addf %61, %60 : vector<1x128xf32>
    %63 = arith.divf %61, %62 : vector<1x128xf32>
    %64 = vector.extract_strided_slice %47 {offsets = [0, 256], sizes = [1, 128], strides = [1, 1]} : vector<1x384xf32> to vector<1x128xf32>
    %65 = vector.extract_strided_slice %45 {offsets = [0, 256], sizes = [1, 128], strides = [1, 1]} : vector<1x384xf32> to vector<1x128xf32>
    %66 = arith.mulf %55, %65 : vector<1x128xf32>
    %67 = arith.addf %64, %66 : vector<1x128xf32>
    %68 = math.tanh %67 : vector<1x128xf32>
    %cst_27 = arith.constant 1.000000e+00 : f32
    %69 = vector.broadcast %cst_27 : f32 to vector<1x128xf32>
    %70 = arith.subf %69, %63 : vector<1x128xf32>
    %71 = arith.mulf %70, %68 : vector<1x128xf32>
    %72 = arith.mulf %63, %39 : vector<1x128xf32>
    %73 = arith.addf %71, %72 : vector<1x128xf32>
    %74 = arith.index_cast %c1_i32 : i32 to index
    %c0_28 = arith.constant 0 : index
    %75 = vector.load %arg6[%74, %c0_28] : memref<8x128xf32, #tpu.memory_space<vmem>>, vector<1x128xf32>
    tpu.vector_store %arg6[%74, %c0_28], %73 {strides = array<i32>} : memref<8x128xf32, #tpu.memory_space<vmem>>, vector<1x128xf32>,
    %c2_i32 = arith.constant 2 : i32
    %c0_29 = arith.constant 0 : index
    %c0_30 = arith.constant 0 : index
    %76 = vector.load %arg3[%c0_29, %c0_30] : memref<128x384xf32, #tpu.memory_space<vmem>>, vector<128x384xf32>
    %cst_31 = arith.constant dense<0.000000e+00> : vector<1x384xf32>
    %77 = tpu.matmul %73, %76, %cst_31 {dimension_numbers = #tpu.dot_dimension_numbers<[1], [0], [0], [1], [0, 0, 1, 1], [], []>} : vector<1x128xf32>, vector<128x384xf32>, vector<1x384xf32> -> vector<1x384xf32>
    %c0_32 = arith.constant 0 : index
    %c0_33 = arith.constant 0 : index
    %78 = vector.load %arg5[%c0_32, %c0_33] : memref<1x384xf32, #tpu.memory_space<vmem>>, vector<1x384xf32>
    %79 = arith.addf %77, %78 : vector<1x384xf32>
    %80 = arith.index_cast %c2_i32 : i32 to index
    %c0_34 = arith.constant 0 : index
    %81 = vector.load %arg7[%80, %c0_34] : memref<8x384xf32, #tpu.memory_space<vmem>>, vector<1x384xf32>
    %82 = vector.extract_strided_slice %81 {offsets = [0, 0], sizes = [1, 128], strides = [1, 1]} : vector<1x384xf32> to vector<1x128xf32>
    %83 = vector.extract_strided_slice %79 {offsets = [0, 0], sizes = [1, 128], strides = [1, 1]} : vector<1x384xf32> to vector<1x128xf32>
    %84 = arith.addf %82, %83 : vector<1x128xf32>
    %85 = arith.negf %84 : vector<1x128xf32>
    %86 = math.exp %85 : vector<1x128xf32>
    %cst_35 = arith.constant 1.000000e+00 : f32
    %87 = vector.broadcast %cst_35 : f32 to vector<1x128xf32>
    %88 = arith.addf %87, %86 : vector<1x128xf32>
    %89 = arith.divf %87, %88 : vector<1x128xf32>
    %90 = vector.extract_strided_slice %81 {offsets = [0, 128], sizes = [1, 128], strides = [1, 1]} : vector<1x384xf32> to vector<1x128xf32>
    %91 = vector.extract_strided_slice %79 {offsets = [0, 128], sizes = [1, 128], strides = [1, 1]} : vector<1x384xf32> to vector<1x128xf32>
    %92 = arith.addf %90, %91 : vector<1x128xf32>
    %93 = arith.negf %92 : vector<1x128xf32>
    %94 = math.exp %93 : vector<1x128xf32>
    %cst_36 = arith.constant 1.000000e+00 : f32
    %95 = vector.broadcast %cst_36 : f32 to vector<1x128xf32>
    %96 = arith.addf %95, %94 : vector<1x128xf32>
    %97 = arith.divf %95, %96 : vector<1x128xf32>
    %98 = vector.extract_strided_slice %81 {offsets = [0, 256], sizes = [1, 128], strides = [1, 1]} : vector<1x384xf32> to vector<1x128xf32>
    %99 = vector.extract_strided_slice %79 {offsets = [0, 256], sizes = [1, 128], strides = [1, 1]} : vector<1x384xf32> to vector<1x128xf32>
    %100 = arith.mulf %89, %99 : vector<1x128xf32>
    %101 = arith.addf %98, %100 : vector<1x128xf32>
    %102 = math.tanh %101 : vector<1x128xf32>
    %cst_37 = arith.constant 1.000000e+00 : f32
    %103 = vector.broadcast %cst_37 : f32 to vector<1x128xf32>
    %104 = arith.subf %103, %97 : vector<1x128xf32>
    %105 = arith.mulf %104, %102 : vector<1x128xf32>
    %106 = arith.mulf %97, %73 : vector<1x128xf32>
    %107 = arith.addf %105, %106 : vector<1x128xf32>
    %108 = arith.index_cast %c2_i32 : i32 to index
    %c0_38 = arith.constant 0 : index
    %109 = vector.load %arg6[%108, %c0_38] : memref<8x128xf32, #tpu.memory_space<vmem>>, vector<1x128xf32>
    tpu.vector_store %arg6[%108, %c0_38], %107 {strides = array<i32>} : memref<8x128xf32, #tpu.memory_space<vmem>>, vector<1x128xf32>,
    %c3_i32 = arith.constant 3 : i32
    %c0_39 = arith.constant 0 : index
    %c0_40 = arith.constant 0 : index
    %110 = vector.load %arg3[%c0_39, %c0_40] : memref<128x384xf32, #tpu.memory_space<vmem>>, vector<128x384xf32>
    %cst_41 = arith.constant dense<0.000000e+00> : vector<1x384xf32>
    %111 = tpu.matmul %107, %110, %cst_41 {dimension_numbers = #tpu.dot_dimension_numbers<[1], [0], [0], [1], [0, 0, 1, 1], [], []>} : vector<1x128xf32>, vector<128x384xf32>, vector<1x384xf32> -> vector<1x384xf32>
    %c0_42 = arith.constant 0 : index
    %c0_43 = arith.constant 0 : index
    %112 = vector.load %arg5[%c0_42, %c0_43] : memref<1x384xf32, #tpu.memory_space<vmem>>, vector<1x384xf32>
    %113 = arith.addf %111, %112 : vector<1x384xf32>
    %114 = arith.index_cast %c3_i32 : i32 to index
    %c0_44 = arith.constant 0 : index
    %115 = vector.load %arg7[%114, %c0_44] : memref<8x384xf32, #tpu.memory_space<vmem>>, vector<1x384xf32>
    %116 = vector.extract_strided_slice %115 {offsets = [0, 0], sizes = [1, 128], strides = [1, 1]} : vector<1x384xf32> to vector<1x128xf32>
    %117 = vector.extract_strided_slice %113 {offsets = [0, 0], sizes = [1, 128], strides = [1, 1]} : vector<1x384xf32> to vector<1x128xf32>
    %118 = arith.addf %116, %117 : vector<1x128xf32>
    %119 = arith.negf %118 : vector<1x128xf32>
    %120 = math.exp %119 : vector<1x128xf32>
    %cst_45 = arith.constant 1.000000e+00 : f32
    %121 = vector.broadcast %cst_45 : f32 to vector<1x128xf32>
    %122 = arith.addf %121, %120 : vector<1x128xf32>
    %123 = arith.divf %121, %122 : vector<1x128xf32>
    %124 = vector.extract_strided_slice %115 {offsets = [0, 128], sizes = [1, 128], strides = [1, 1]} : vector<1x384xf32> to vector<1x128xf32>
    %125 = vector.extract_strided_slice %113 {offsets = [0, 128], sizes = [1, 128], strides = [1, 1]} : vector<1x384xf32> to vector<1x128xf32>
    %126 = arith.addf %124, %125 : vector<1x128xf32>
    %127 = arith.negf %126 : vector<1x128xf32>
    %128 = math.exp %127 : vector<1x128xf32>
    %cst_46 = arith.constant 1.000000e+00 : f32
    %129 = vector.broadcast %cst_46 : f32 to vector<1x128xf32>
    %130 = arith.addf %129, %128 : vector<1x128xf32>
    %131 = arith.divf %129, %130 : vector<1x128xf32>
    %132 = vector.extract_strided_slice %115 {offsets = [0, 256], sizes = [1, 128], strides = [1, 1]} : vector<1x384xf32> to vector<1x128xf32>
    %133 = vector.extract_strided_slice %113 {offsets = [0, 256], sizes = [1, 128], strides = [1, 1]} : vector<1x384xf32> to vector<1x128xf32>
    %134 = arith.mulf %123, %133 : vector<1x128xf32>
    %135 = arith.addf %132, %134 : vector<1x128xf32>
    %136 = math.tanh %135 : vector<1x128xf32>
    %cst_47 = arith.constant 1.000000e+00 : f32
    %137 = vector.broadcast %cst_47 : f32 to vector<1x128xf32>
    %138 = arith.subf %137, %131 : vector<1x128xf32>
    %139 = arith.mulf %138, %136 : vector<1x128xf32>
    %140 = arith.mulf %131, %107 : vector<1x128xf32>
    %141 = arith.addf %139, %140 : vector<1x128xf32>
    %142 = arith.index_cast %c3_i32 : i32 to index
    %c0_48 = arith.constant 0 : index
    %143 = vector.load %arg6[%142, %c0_48] : memref<8x128xf32, #tpu.memory_space<vmem>>, vector<1x128xf32>
    tpu.vector_store %arg6[%142, %c0_48], %141 {strides = array<i32>} : memref<8x128xf32, #tpu.memory_space<vmem>>, vector<1x128xf32>,
    %c4_i32 = arith.constant 4 : i32
    %c0_49 = arith.constant 0 : index
    %c0_50 = arith.constant 0 : index
    %144 = vector.load %arg3[%c0_49, %c0_50] : memref<128x384xf32, #tpu.memory_space<vmem>>, vector<128x384xf32>
    %cst_51 = arith.constant dense<0.000000e+00> : vector<1x384xf32>
    %145 = tpu.matmul %141, %144, %cst_51 {dimension_numbers = #tpu.dot_dimension_numbers<[1], [0], [0], [1], [0, 0, 1, 1], [], []>} : vector<1x128xf32>, vector<128x384xf32>, vector<1x384xf32> -> vector<1x384xf32>
    %c0_52 = arith.constant 0 : index
    %c0_53 = arith.constant 0 : index
    %146 = vector.load %arg5[%c0_52, %c0_53] : memref<1x384xf32, #tpu.memory_space<vmem>>, vector<1x384xf32>
    %147 = arith.addf %145, %146 : vector<1x384xf32>
    %148 = arith.index_cast %c4_i32 : i32 to index
    %c0_54 = arith.constant 0 : index
    %149 = vector.load %arg7[%148, %c0_54] : memref<8x384xf32, #tpu.memory_space<vmem>>, vector<1x384xf32>
    %150 = vector.extract_strided_slice %149 {offsets = [0, 0], sizes = [1, 128], strides = [1, 1]} : vector<1x384xf32> to vector<1x128xf32>
    %151 = vector.extract_strided_slice %147 {offsets = [0, 0], sizes = [1, 128], strides = [1, 1]} : vector<1x384xf32> to vector<1x128xf32>
    %152 = arith.addf %150, %151 : vector<1x128xf32>
    %153 = arith.negf %152 : vector<1x128xf32>
    %154 = math.exp %153 : vector<1x128xf32>
    %cst_55 = arith.constant 1.000000e+00 : f32
    %155 = vector.broadcast %cst_55 : f32 to vector<1x128xf32>
    %156 = arith.addf %155, %154 : vector<1x128xf32>
    %157 = arith.divf %155, %156 : vector<1x128xf32>
    %158 = vector.extract_strided_slice %149 {offsets = [0, 128], sizes = [1, 128], strides = [1, 1]} : vector<1x384xf32> to vector<1x128xf32>
    %159 = vector.extract_strided_slice %147 {offsets = [0, 128], sizes = [1, 128], strides = [1, 1]} : vector<1x384xf32> to vector<1x128xf32>
    %160 = arith.addf %158, %159 : vector<1x128xf32>
    %161 = arith.negf %160 : vector<1x128xf32>
    %162 = math.exp %161 : vector<1x128xf32>
    %cst_56 = arith.constant 1.000000e+00 : f32
    %163 = vector.broadcast %cst_56 : f32 to vector<1x128xf32>
    %164 = arith.addf %163, %162 : vector<1x128xf32>
    %165 = arith.divf %163, %164 : vector<1x128xf32>
    %166 = vector.extract_strided_slice %149 {offsets = [0, 256], sizes = [1, 128], strides = [1, 1]} : vector<1x384xf32> to vector<1x128xf32>
    %167 = vector.extract_strided_slice %147 {offsets = [0, 256], sizes = [1, 128], strides = [1, 1]} : vector<1x384xf32> to vector<1x128xf32>
    %168 = arith.mulf %157, %167 : vector<1x128xf32>
    %169 = arith.addf %166, %168 : vector<1x128xf32>
    %170 = math.tanh %169 : vector<1x128xf32>
    %cst_57 = arith.constant 1.000000e+00 : f32
    %171 = vector.broadcast %cst_57 : f32 to vector<1x128xf32>
    %172 = arith.subf %171, %165 : vector<1x128xf32>
    %173 = arith.mulf %172, %170 : vector<1x128xf32>
    %174 = arith.mulf %165, %141 : vector<1x128xf32>
    %175 = arith.addf %173, %174 : vector<1x128xf32>
    %176 = arith.index_cast %c4_i32 : i32 to index
    %c0_58 = arith.constant 0 : index
    %177 = vector.load %arg6[%176, %c0_58] : memref<8x128xf32, #tpu.memory_space<vmem>>, vector<1x128xf32>
    tpu.vector_store %arg6[%176, %c0_58], %175 {strides = array<i32>} : memref<8x128xf32, #tpu.memory_space<vmem>>, vector<1x128xf32>,
    %c5_i32 = arith.constant 5 : i32
    %c0_59 = arith.constant 0 : index
    %c0_60 = arith.constant 0 : index
    %178 = vector.load %arg3[%c0_59, %c0_60] : memref<128x384xf32, #tpu.memory_space<vmem>>, vector<128x384xf32>
    %cst_61 = arith.constant dense<0.000000e+00> : vector<1x384xf32>
    %179 = tpu.matmul %175, %178, %cst_61 {dimension_numbers = #tpu.dot_dimension_numbers<[1], [0], [0], [1], [0, 0, 1, 1], [], []>} : vector<1x128xf32>, vector<128x384xf32>, vector<1x384xf32> -> vector<1x384xf32>
    %c0_62 = arith.constant 0 : index
    %c0_63 = arith.constant 0 : index
    %180 = vector.load %arg5[%c0_62, %c0_63] : memref<1x384xf32, #tpu.memory_space<vmem>>, vector<1x384xf32>
    %181 = arith.addf %179, %180 : vector<1x384xf32>
    %182 = arith.index_cast %c5_i32 : i32 to index
    %c0_64 = arith.constant 0 : index
    %183 = vector.load %arg7[%182, %c0_64] : memref<8x384xf32, #tpu.memory_space<vmem>>, vector<1x384xf32>
    %184 = vector.extract_strided_slice %183 {offsets = [0, 0], sizes = [1, 128], strides = [1, 1]} : vector<1x384xf32> to vector<1x128xf32>
    %185 = vector.extract_strided_slice %181 {offsets = [0, 0], sizes = [1, 128], strides = [1, 1]} : vector<1x384xf32> to vector<1x128xf32>
    %186 = arith.addf %184, %185 : vector<1x128xf32>
    %187 = arith.negf %186 : vector<1x128xf32>
    %188 = math.exp %187 : vector<1x128xf32>
    %cst_65 = arith.constant 1.000000e+00 : f32
    %189 = vector.broadcast %cst_65 : f32 to vector<1x128xf32>
    %190 = arith.addf %189, %188 : vector<1x128xf32>
    %191 = arith.divf %189, %190 : vector<1x128xf32>
    %192 = vector.extract_strided_slice %183 {offsets = [0, 128], sizes = [1, 128], strides = [1, 1]} : vector<1x384xf32> to vector<1x128xf32>
    %193 = vector.extract_strided_slice %181 {offsets = [0, 128], sizes = [1, 128], strides = [1, 1]} : vector<1x384xf32> to vector<1x128xf32>
    %194 = arith.addf %192, %193 : vector<1x128xf32>
    %195 = arith.negf %194 : vector<1x128xf32>
    %196 = math.exp %195 : vector<1x128xf32>
    %cst_66 = arith.constant 1.000000e+00 : f32
    %197 = vector.broadcast %cst_66 : f32 to vector<1x128xf32>
    %198 = arith.addf %197, %196 : vector<1x128xf32>
    %199 = arith.divf %197, %198 : vector<1x128xf32>
    %200 = vector.extract_strided_slice %183 {offsets = [0, 256], sizes = [1, 128], strides = [1, 1]} : vector<1x384xf32> to vector<1x128xf32>
    %201 = vector.extract_strided_slice %181 {offsets = [0, 256], sizes = [1, 128], strides = [1, 1]} : vector<1x384xf32> to vector<1x128xf32>
    %202 = arith.mulf %191, %201 : vector<1x128xf32>
    %203 = arith.addf %200, %202 : vector<1x128xf32>
    %204 = math.tanh %203 : vector<1x128xf32>
    %cst_67 = arith.constant 1.000000e+00 : f32
    %205 = vector.broadcast %cst_67 : f32 to vector<1x128xf32>
    %206 = arith.subf %205, %199 : vector<1x128xf32>
    %207 = arith.mulf %206, %204 : vector<1x128xf32>
    %208 = arith.mulf %199, %175 : vector<1x128xf32>
    %209 = arith.addf %207, %208 : vector<1x128xf32>
    %210 = arith.index_cast %c5_i32 : i32 to index
    %c0_68 = arith.constant 0 : index
    %211 = vector.load %arg6[%210, %c0_68] : memref<8x128xf32, #tpu.memory_space<vmem>>, vector<1x128xf32>
    tpu.vector_store %arg6[%210, %c0_68], %209 {strides = array<i32>} : memref<8x128xf32, #tpu.memory_space<vmem>>, vector<1x128xf32>,
    %c6_i32 = arith.constant 6 : i32
    %c0_69 = arith.constant 0 : index
    %c0_70 = arith.constant 0 : index
    %212 = vector.load %arg3[%c0_69, %c0_70] : memref<128x384xf32, #tpu.memory_space<vmem>>, vector<128x384xf32>
    %cst_71 = arith.constant dense<0.000000e+00> : vector<1x384xf32>
    %213 = tpu.matmul %209, %212, %cst_71 {dimension_numbers = #tpu.dot_dimension_numbers<[1], [0], [0], [1], [0, 0, 1, 1], [], []>} : vector<1x128xf32>, vector<128x384xf32>, vector<1x384xf32> -> vector<1x384xf32>
    %c0_72 = arith.constant 0 : index
    %c0_73 = arith.constant 0 : index
    %214 = vector.load %arg5[%c0_72, %c0_73] : memref<1x384xf32, #tpu.memory_space<vmem>>, vector<1x384xf32>
    %215 = arith.addf %213, %214 : vector<1x384xf32>
    %216 = arith.index_cast %c6_i32 : i32 to index
    %c0_74 = arith.constant 0 : index
    %217 = vector.load %arg7[%216, %c0_74] : memref<8x384xf32, #tpu.memory_space<vmem>>, vector<1x384xf32>
    %218 = vector.extract_strided_slice %217 {offsets = [0, 0], sizes = [1, 128], strides = [1, 1]} : vector<1x384xf32> to vector<1x128xf32>
    %219 = vector.extract_strided_slice %215 {offsets = [0, 0], sizes = [1, 128], strides = [1, 1]} : vector<1x384xf32> to vector<1x128xf32>
    %220 = arith.addf %218, %219 : vector<1x128xf32>
    %221 = arith.negf %220 : vector<1x128xf32>
    %222 = math.exp %221 : vector<1x128xf32>
    %cst_75 = arith.constant 1.000000e+00 : f32
    %223 = vector.broadcast %cst_75 : f32 to vector<1x128xf32>
    %224 = arith.addf %223, %222 : vector<1x128xf32>
    %225 = arith.divf %223, %224 : vector<1x128xf32>
    %226 = vector.extract_strided_slice %217 {offsets = [0, 128], sizes = [1, 128], strides = [1, 1]} : vector<1x384xf32> to vector<1x128xf32>
    %227 = vector.extract_strided_slice %215 {offsets = [0, 128], sizes = [1, 128], strides = [1, 1]} : vector<1x384xf32> to vector<1x128xf32>
    %228 = arith.addf %226, %227 : vector<1x128xf32>
    %229 = arith.negf %228 : vector<1x128xf32>
    %230 = math.exp %229 : vector<1x128xf32>
    %cst_76 = arith.constant 1.000000e+00 : f32
    %231 = vector.broadcast %cst_76 : f32 to vector<1x128xf32>
    %232 = arith.addf %231, %230 : vector<1x128xf32>
    %233 = arith.divf %231, %232 : vector<1x128xf32>
    %234 = vector.extract_strided_slice %217 {offsets = [0, 256], sizes = [1, 128], strides = [1, 1]} : vector<1x384xf32> to vector<1x128xf32>
    %235 = vector.extract_strided_slice %215 {offsets = [0, 256], sizes = [1, 128], strides = [1, 1]} : vector<1x384xf32> to vector<1x128xf32>
    %236 = arith.mulf %225, %235 : vector<1x128xf32>
    %237 = arith.addf %234, %236 : vector<1x128xf32>
    %238 = math.tanh %237 : vector<1x128xf32>
    %cst_77 = arith.constant 1.000000e+00 : f32
    %239 = vector.broadcast %cst_77 : f32 to vector<1x128xf32>
    %240 = arith.subf %239, %233 : vector<1x128xf32>
    %241 = arith.mulf %240, %238 : vector<1x128xf32>
    %242 = arith.mulf %233, %209 : vector<1x128xf32>
    %243 = arith.addf %241, %242 : vector<1x128xf32>
    %244 = arith.index_cast %c6_i32 : i32 to index
    %c0_78 = arith.constant 0 : index
    %245 = vector.load %arg6[%244, %c0_78] : memref<8x128xf32, #tpu.memory_space<vmem>>, vector<1x128xf32>
    tpu.vector_store %arg6[%244, %c0_78], %243 {strides = array<i32>} : memref<8x128xf32, #tpu.memory_space<vmem>>, vector<1x128xf32>,
    %c7_i32 = arith.constant 7 : i32
    %c0_79 = arith.constant 0 : index
    %c0_80 = arith.constant 0 : index
    %246 = vector.load %arg3[%c0_79, %c0_80] : memref<128x384xf32, #tpu.memory_space<vmem>>, vector<128x384xf32>
    %cst_81 = arith.constant dense<0.000000e+00> : vector<1x384xf32>
    %247 = tpu.matmul %243, %246, %cst_81 {dimension_numbers = #tpu.dot_dimension_numbers<[1], [0], [0], [1], [0, 0, 1, 1], [], []>} : vector<1x128xf32>, vector<128x384xf32>, vector<1x384xf32> -> vector<1x384xf32>
    %c0_82 = arith.constant 0 : index
    %c0_83 = arith.constant 0 : index
    %248 = vector.load %arg5[%c0_82, %c0_83] : memref<1x384xf32, #tpu.memory_space<vmem>>, vector<1x384xf32>
    %249 = arith.addf %247, %248 : vector<1x384xf32>
    %250 = arith.index_cast %c7_i32 : i32 to index
    %c0_84 = arith.constant 0 : index
    %251 = vector.load %arg7[%250, %c0_84] : memref<8x384xf32, #tpu.memory_space<vmem>>, vector<1x384xf32>
    %252 = vector.extract_strided_slice %251 {offsets = [0, 0], sizes = [1, 128], strides = [1, 1]} : vector<1x384xf32> to vector<1x128xf32>
    %253 = vector.extract_strided_slice %249 {offsets = [0, 0], sizes = [1, 128], strides = [1, 1]} : vector<1x384xf32> to vector<1x128xf32>
    %254 = arith.addf %252, %253 : vector<1x128xf32>
    %255 = arith.negf %254 : vector<1x128xf32>
    %256 = math.exp %255 : vector<1x128xf32>
    %cst_85 = arith.constant 1.000000e+00 : f32
    %257 = vector.broadcast %cst_85 : f32 to vector<1x128xf32>
    %258 = arith.addf %257, %256 : vector<1x128xf32>
    %259 = arith.divf %257, %258 : vector<1x128xf32>
    %260 = vector.extract_strided_slice %251 {offsets = [0, 128], sizes = [1, 128], strides = [1, 1]} : vector<1x384xf32> to vector<1x128xf32>
    %261 = vector.extract_strided_slice %249 {offsets = [0, 128], sizes = [1, 128], strides = [1, 1]} : vector<1x384xf32> to vector<1x128xf32>
    %262 = arith.addf %260, %261 : vector<1x128xf32>
    %263 = arith.negf %262 : vector<1x128xf32>
    %264 = math.exp %263 : vector<1x128xf32>
    %cst_86 = arith.constant 1.000000e+00 : f32
    %265 = vector.broadcast %cst_86 : f32 to vector<1x128xf32>
    %266 = arith.addf %265, %264 : vector<1x128xf32>
    %267 = arith.divf %265, %266 : vector<1x128xf32>
    %268 = vector.extract_strided_slice %251 {offsets = [0, 256], sizes = [1, 128], strides = [1, 1]} : vector<1x384xf32> to vector<1x128xf32>
    %269 = vector.extract_strided_slice %249 {offsets = [0, 256], sizes = [1, 128], strides = [1, 1]} : vector<1x384xf32> to vector<1x128xf32>
    %270 = arith.mulf %259, %269 : vector<1x128xf32>
    %271 = arith.addf %268, %270 : vector<1x128xf32>
    %272 = math.tanh %271 : vector<1x128xf32>
    %cst_87 = arith.constant 1.000000e+00 : f32
    %273 = vector.broadcast %cst_87 : f32 to vector<1x128xf32>
    %274 = arith.subf %273, %267 : vector<1x128xf32>
    %275 = arith.mulf %274, %272 : vector<1x128xf32>
    %276 = arith.mulf %267, %243 : vector<1x128xf32>
    %277 = arith.addf %275, %276 : vector<1x128xf32>
    %278 = arith.index_cast %c7_i32 : i32 to index
    %c0_88 = arith.constant 0 : index
    %279 = vector.load %arg6[%278, %c0_88] : memref<8x128xf32, #tpu.memory_space<vmem>>, vector<1x128xf32>
    tpu.vector_store %arg6[%278, %c0_88], %277 {strides = array<i32>} : memref<8x128xf32, #tpu.memory_space<vmem>>, vector<1x128xf32>,
    %c8_i32 = arith.constant 8 : i32
    return
  }
}

</mosaic_0001>

<llo_original>
// kernel: tpu_custom_call.1
$region0: #{tpu_custom_call.1}
  #allocation0 [shape = 'u32[]', space=smem, size = 0x4, offset = 0x4, fixed_abs, tag = 'smem constant byte address 0x4 - core index']
  #allocation1 [shape = 'u32[144,128]{1,0:T(1,128)}', space=vmem, size = 0x12000, scoped, tag = 'internal scratch']
  #allocation2 [shape = 'f32[8,384]{1,0:T(8,128)}', space=vmem, size = 0x3000, scoped, tag = 'scratch operand']
  %s0 = inlined_call_operand.hbm [shape: f32[8,128], index: 0, kind: input, shape index: {}]
  %s1 = inlined_call_operand.vmem [shape: f32[1,128], index: 1, kind: input, shape index: {}]
  %s2 = inlined_call_operand.hbm [shape: f32[128,384], index: 2, kind: input, shape index: {}]
  %s3 = inlined_call_operand.hbm [shape: f32[128,384], index: 3, kind: input, shape index: {}]
  %s4 = inlined_call_operand.vmem [shape: f32[1,384], index: 4, kind: input, shape index: {}]
  %s5 = inlined_call_operand.vmem [shape: f32[1,384], index: 5, kind: input, shape index: {}]
  %s6 = inlined_call_operand.hbm [shape: f32[8,128], index: 6, kind: output, shape index: {}]
  %s7 = sld [smem:[#allocation0]]
  $region46: #{tpu_custom_call.1} parent=0
    _
  %s9 = ssub.s32 1, %s7
  %s10 = scalar_select 0, %s9, %s7
  $region1: #{tpu_custom_call.1} parent=0
    #allocation3 [shape = 'u8[4096]{0}', space=vmem, size = 0x1000, scoped, tag = 'input window, operand 0, single buffered']
    #allocation4 [shape = 's32[1]{0}', space=sflag, size = 0x4, scoped, tag = 'scoped memory for tpu_custom_call.1']
    #allocation5 [shape = 's32[1]{0}', space=sflag, size = 0x4, scoped, tag = 'scoped memory for tpu_custom_call.1']
    #allocation6 [shape = 'u8[196608]{0}', space=vmem, size = 0x30000, scoped, tag = 'input window, operand 2, single buffered']
    #allocation7 [shape = 's32[1]{0}', space=sflag, size = 0x4, scoped, tag = 'scoped memory for tpu_custom_call.1']
    #allocation8 [shape = 'u8[196608]{0}', space=vmem, size = 0x30000, scoped, tag = 'input window, operand 3, single buffered']
    #allocation9 [shape = 'u8[4096]{0}', space=vmem, size = 0x1000, scoped, tag = 'output window, operand 0, single buffered']
    %11 = vsyncpa [#allocation4], 0
    %12 = vsyncpa [#allocation7], 0
    %13 = vsyncpa [#allocation5], 0
    // Predicated region
    $region2: #{tpu_custom_call.1} parent=1 // pred_check
      _
    $region3: #{tpu_custom_call.1} parent=1 // pred_check_branch
      %15 = sbr.rel (0) target = $region5
    $region4: #{tpu_custom_call.1} parent=1 // pred_region
      %s17 = ssub.s32 128, 128
      %18 = vsyncadd [#allocation4], %s17
      %s20 = sshll.u32 [#allocation3], 4
      %s21 = int_to_ptr.vmem [resolvable:$true] %s20
      %23 = dma.hbm_to_vmem [thread:$0]  %s0, 128, %s21, [#allocation4]
    $region5: #{tpu_custom_call.1} parent=1 // pred_fallthru
      _
    // Predicated region
    $region6: #{tpu_custom_call.1} parent=1 // pred_check
      _
    $region7: #{tpu_custom_call.1} parent=1 // pred_check_branch
      %25 = sbr.rel (0) target = $region9
    $region8: #{tpu_custom_call.1} parent=1 // pred_region
      _
    $region9: #{tpu_custom_call.1} parent=1 // pred_fallthru
      _
    // Predicated region
    $region10: #{tpu_custom_call.1} parent=1 // pred_check
      _
    $region11: #{tpu_custom_call.1} parent=1 // pred_check_branch
      %27 = sbr.rel (0) target = $region13
    $region12: #{tpu_custom_call.1} parent=1 // pred_region
      %s29 = ssub.s32 6144, 6144
      %30 = vsyncadd [#allocation7], %s29
      %s31 = sshll.u32 [#allocation6], 4
      %s32 = int_to_ptr.vmem [resolvable:$true] %s31
      %37 = dma.hbm_to_vmem [thread:$0]  %s2, 6144, %s32, [#allocation7], 384, 384, 24
    $region13: #{tpu_custom_call.1} parent=1 // pred_fallthru
      _
    // Predicated region
    $region14: #{tpu_custom_call.1} parent=1 // pred_check
      _
    $region15: #{tpu_custom_call.1} parent=1 // pred_check_branch
      %39 = sbr.rel (0) target = $region17
    $region16: #{tpu_custom_call.1} parent=1 // pred_region
      %s41 = ssub.s32 6144, 6144
      %42 = vsyncadd [#allocation7], %s41
      %s43 = sshll.u32 [#allocation8], 4
      %s44 = int_to_ptr.vmem [resolvable:$true] %s43
      %49 = dma.hbm_to_vmem [thread:$0]  %s3, 6144, %s44, [#allocation7], 384, 384, 24
    $region17: #{tpu_custom_call.1} parent=1 // pred_fallthru
      _
    // Predicated region
    $region18: #{tpu_custom_call.1} parent=1 // pred_check
      _
    $region19: #{tpu_custom_call.1} parent=1 // pred_check_branch
      %51 = sbr.rel (0) target = $region21
    $region20: #{tpu_custom_call.1} parent=1 // pred_region
      _
    $region21: #{tpu_custom_call.1} parent=1 // pred_fallthru
      _
    // Predicated region
    $region22: #{tpu_custom_call.1} parent=1 // pred_check
      _
    $region23: #{tpu_custom_call.1} parent=1 // pred_check_branch
      %53 = sbr.rel (0) target = $region25
    $region24: #{tpu_custom_call.1} parent=1 // pred_region
      _
    $region25: #{tpu_custom_call.1} parent=1 // pred_fallthru
      _
    // Predicated region
    $region26: #{tpu_custom_call.1} parent=1 // pred_check
      _
    $region27: #{tpu_custom_call.1} parent=1 // pred_check_branch
      %55 = sbr.rel (0) target = $region29
    $region28: #{tpu_custom_call.1} parent=1 // pred_region
      %56 = dma.done [#allocation4], 128
    $region29: #{tpu_custom_call.1} parent=1 // pred_fallthru
      _
    // Predicated region
    $region30: #{tpu_custom_call.1} parent=1 // pred_check
      _
    $region31: #{tpu_custom_call.1} parent=1 // pred_check_branch
      %58 = sbr.rel (0) target = $region33
    $region32: #{tpu_custom_call.1} parent=1 // pred_region
      %59 = dma.done [#allocation7], 6144
    $region33: #{tpu_custom_call.1} parent=1 // pred_fallthru
      _
    // Predicated region
    $region34: #{tpu_custom_call.1} parent=1 // pred_check
      _
    $region35: #{tpu_custom_call.1} parent=1 // pred_check_branch
      %61 = sbr.rel (0) target = $region37
    $region36: #{tpu_custom_call.1} parent=1 // pred_region
      %62 = dma.done [#allocation7], 6144
    $region37: #{tpu_custom_call.1} parent=1 // pred_fallthru
      _
    %v63 = vld [vmem:[#allocation3] sm:$0xff]
    %v64 = vld [vmem:[#allocation6] sm:$0xff]
    %v65 = vld [vmem:[#allocation6 + $0x8] sm:$0xff]
    %v66 = vld [vmem:[#allocation6 + $0x10] sm:$0xff]
    %v67 = vld [vmem:[#allocation6 + $0x18] sm:$0xff]
    %v68 = vld [vmem:[#allocation6 + $0x20] sm:$0xff]
    %v69 = vld [vmem:[#allocation6 + $0x28] sm:$0xff]
    %v70 = vld [vmem:[#allocation6 + $0x30] sm:$0xff]
    %v71 = vld [vmem:[#allocation6 + $0x38] sm:$0xff]
    %v72 = vld [vmem:[#allocation6 + $0x40] sm:$0xff]
    %v73 = vld [vmem:[#allocation6 + $0x48] sm:$0xff]
    %v74 = vld [vmem:[#allocation6 + $0x50] sm:$0xff]
    %v75 = vld [vmem:[#allocation6 + $0x58] sm:$0xff]
    %v76 = vld [vmem:[#allocation6 + $0x60] sm:$0xff]
    %v77 = vld [vmem:[#allocation6 + $0x68] sm:$0xff]
    %v78 = vld [vmem:[#allocation6 + $0x70] sm:$0xff]
    %v79 = vld [vmem:[#allocation6 + $0x78] sm:$0xff]
    %v80 = vld [vmem:[#allocation6 + $0x80] sm:$0xff]
    %v81 = vld [vmem:[#allocation6 + $0x88] sm:$0xff]
    %v82 = vld [vmem:[#allocation6 + $0x90] sm:$0xff]
    %v83 = vld [vmem:[#allocation6 + $0x98] sm:$0xff]
    %v84 = vld [vmem:[#allocation6 + $0xa0] sm:$0xff]
    %v85 = vld [vmem:[#allocation6 + $0xa8] sm:$0xff]
    %v86 = vld [vmem:[#allocation6 + $0xb0] sm:$0xff]
    %v87 = vld [vmem:[#allocation6 + $0xb8] sm:$0xff]
    %v88 = vld [vmem:[#allocation6 + $0xc0] sm:$0xff]
    %v89 = vld [vmem:[#allocation6 + $0xc8] sm:$0xff]
    %v90 = vld [vmem:[#allocation6 + $0xd0] sm:$0xff]
    %v91 = vld [vmem:[#allocation6 + $0xd8] sm:$0xff]
    %v92 = vld [vmem:[#allocation6 + $0xe0] sm:$0xff]
    %v93 = vld [vmem:[#allocation6 + $0xe8] sm:$0xff]
    %v94 = vld [vmem:[#allocation6 + $0xf0] sm:$0xff]
    %v95 = vld [vmem:[#allocation6 + $0xf8] sm:$0xff]
    %v96 = vld [vmem:[#allocation6 + $0x100] sm:$0xff]
    %v97 = vld [vmem:[#allocation6 + $0x108] sm:$0xff]
    %v98 = vld [vmem:[#allocation6 + $0x110] sm:$0xff]
    %v99 = vld [vmem:[#allocation6 + $0x118] sm:$0xff]
    %v100 = vld [vmem:[#allocation6 + $0x120] sm:$0xff]
    %v101 = vld [vmem:[#allocation6 + $0x128] sm:$0xff]
    %v102 = vld [vmem:[#allocation6 + $0x130] sm:$0xff]
    %v103 = vld [vmem:[#allocation6 + $0x138] sm:$0xff]
    %v104 = vld [vmem:[#allocation6 + $0x140] sm:$0xff]
    %v105 = vld [vmem:[#allocation6 + $0x148] sm:$0xff]
    %v106 = vld [vmem:[#allocation6 + $0x150] sm:$0xff]
    %v107 = vld [vmem:[#allocation6 + $0x158] sm:$0xff]
    %v108 = vld [vmem:[#allocation6 + $0x160] sm:$0xff]
    %v109 = vld [vmem:[#allocation6 + $0x168] sm:$0xff]
    %v110 = vld [vmem:[#allocation6 + $0x170] sm:$0xff]
    %v111 = vld [vmem:[#allocation6 + $0x178] sm:$0xff]
    %v112 = vld [vmem:[%s4] sm:$0x7]
    %v114 = vlaneseq
    %v115 = vshrl.u32 %v114, 7
    %v116 = vsub.s32 0, %v115
    %v117 = vrot.slane %v112, %v116
    %v118 = vlaneseq
    %v119 = vshrl.u32 %v118, 7
    %v120 = vsub.s32 1, %v119
    %v121 = vrot.slane %v112, %v120
    %v122 = vlaneseq
    %v123 = vshrl.u32 %v122, 7
    %v124 = vsub.s32 2, %v123
    %v125 = vrot.slane %v112, %v124
    %129 = vmatprep.subr.mxu0 %v65
    %130 = vmatpush1.msra.mxu0 %v64
    %131 = vmatprep.subr.mxu0 %v68
    %132 = vmatpush1.msra.mxu0 %v67
    %133 = vmatprep.subr.mxu0 %v71
    %134 = vmatpush1.msra.mxu0 %v70
    %135 = vmatprep.subr.mxu0 %v74
    %136 = vmatpush1.msra.mxu0 %v73
    %137 = vmatprep.subr.mxu0 %v77
    %138 = vmatpush1.msra.mxu0 %v76
    %139 = vmatprep.subr.mxu0 %v80
    %140 = vmatpush1.msra.mxu0 %v79
    %141 = vmatprep.subr.mxu0 %v83
    %142 = vmatpush1.msra.mxu0 %v82
    %143 = vmatprep.subr.mxu0 %v86
    %144 = vmatpush1.msra.mxu0 %v85
    %145 = vmatprep.subr.mxu0 %v89
    %146 = vmatpush1.msra.mxu0 %v88
    %147 = vmatprep.subr.mxu0 %v92
    %148 = vmatpush1.msra.mxu0 %v91
    %149 = vmatprep.subr.mxu0 %v95
    %150 = vmatpush1.msra.mxu0 %v94
    %151 = vmatprep.subr.mxu0 %v98
    %152 = vmatpush1.msra.mxu0 %v97
    %153 = vmatprep.subr.mxu0 %v101
    %154 = vmatpush1.msra.mxu0 %v100
    %155 = vmatprep.subr.mxu0 %v104
    %156 = vmatpush1.msra.mxu0 %v103
    %157 = vmatprep.subr.mxu0 %v107
    %158 = vmatpush1.msra.mxu0 %v106
    %159 = vmatprep.subr.mxu0 %v110
    %160 = vmatpush1.msra.mxu0 %v109
    %161 = vmatprep.subr.mxu0 0.0
    %162 = vmatpush1.msra.mxu0 0.0
    %163 = vmatprep.subr.mxu0 0.0
    %164 = vmatpush1.msra.mxu0 0.0
    %165 = vmatprep.subr.mxu0 0.0
    %166 = vmatpush1.msra.mxu0 0.0
    %167 = vmatprep.subr.mxu0 0.0
    %168 = vmatpush1.msra.mxu0 0.0
    %169 = vmatprep.subr.mxu0 0.0
    %170 = vmatpush1.msra.mxu0 0.0
    %171 = vmatprep.subr.mxu0 0.0
    %172 = vmatpush1.msra.mxu0 0.0
    %173 = vmatprep.subr.mxu0 0.0
    %174 = vmatpush1.msra.mxu0 0.0
    %175 = vmatprep.subr.mxu0 0.0
    %176 = vmatpush1.msra.mxu0 0.0
    %177 = vmatprep.subr.mxu0 0.0
    %178 = vmatpush1.msra.mxu0 0.0
    %179 = vmatprep.subr.mxu0 0.0
    %180 = vmatpush1.msra.mxu0 0.0
    %181 = vmatprep.subr.mxu0 0.0
    %182 = vmatpush1.msra.mxu0 0.0
    %183 = vmatprep.subr.mxu0 0.0
    %184 = vmatpush1.msra.mxu0 0.0
    %185 = vmatprep.subr.mxu0 0.0
    %186 = vmatpush1.msra.mxu0 0.0
    %187 = vmatprep.subr.mxu0 0.0
    %188 = vmatpush1.msra.mxu0 0.0
    %189 = vmatprep.subr.mxu0 0.0
    %190 = vmatpush1.msra.mxu0 0.0
    %191 = vmatprep.subr.mxu0 0.0
    %192 = vmatpush1.msra.mxu0 0.0
    %193 = vmatprep.mubr.f32.mxu0 0.0
    %194 = vmatmul.mubr.f32.gmra.mrb[0].mxu0 %v63
    %v195 = vpop.f32.mrb[0].mxu0
    %v196 = vadd.f32 %v117, %v195
    %v197 = vpop.f32.mrb[0].mxu0
    %v198 = vadd.f32 %v121, %v197
    %199 = vdwg.mxu0
    %200 = vmatprep.subr.mxu0 0.0
    %201 = vmatpush1.msra.mxu0 %v66
    %202 = vmatprep.subr.mxu0 0.0
    %203 = vmatpush1.msra.mxu0 %v69
    %204 = vmatprep.subr.mxu0 0.0
    %205 = vmatpush1.msra.mxu0 %v72
    %206 = vmatprep.subr.mxu0 0.0
    %207 = vmatpush1.msra.mxu0 %v75
    %208 = vmatprep.subr.mxu0 0.0
    %209 = vmatpush1.msra.mxu0 %v78
    %210 = vmatprep.subr.mxu0 0.0
    %211 = vmatpush1.msra.mxu0 %v81
    %212 = vmatprep.subr.mxu0 0.0
    %213 = vmatpush1.msra.mxu0 %v84
    %214 = vmatprep.subr.mxu0 0.0
    %215 = vmatpush1.msra.mxu0 %v87
    %216 = vmatprep.subr.mxu0 0.0
    %217 = vmatpush1.msra.mxu0 %v90
    %218 = vmatprep.subr.mxu0 0.0
    %219 = vmatpush1.msra.mxu0 %v93
    %220 = vmatprep.subr.mxu0 0.0
    %221 = vmatpush1.msra.mxu0 %v96
    %222 = vmatprep.subr.mxu0 0.0
    %223 = vmatpush1.msra.mxu0 %v99
    %224 = vmatprep.subr.mxu0 0.0
    %225 = vmatpush1.msra.mxu0 %v102
    %226 = vmatprep.subr.mxu0 0.0
    %227 = vmatpush1.msra.mxu0 %v105
    %228 = vmatprep.subr.mxu0 0.0
    %229 = vmatpush1.msra.mxu0 %v108
    %230 = vmatprep.subr.mxu0 0.0
    %231 = vmatpush1.msra.mxu0 %v111
    %232 = vmatprep.subr.mxu0 0.0
    %233 = vmatpush1.msra.mxu0 0.0
    %234 = vmatprep.subr.mxu0 0.0
    %235 = vmatpush1.msra.mxu0 0.0
    %236 = vmatprep.subr.mxu0 0.0
    %237 = vmatpush1.msra.mxu0 0.0
    %238 = vmatprep.subr.mxu0 0.0
    %239 = vmatpush1.msra.mxu0 0.0
    %240 = vmatprep.subr.mxu0 0.0
    %241 = vmatpush1.msra.mxu0 0.0
    %242 = vmatprep.subr.mxu0 0.0
    %243 = vmatpush1.msra.mxu0 0.0
    %244 = vmatprep.subr.mxu0 0.0
    %245 = vmatpush1.msra.mxu0 0.0
    %246 = vmatprep.subr.mxu0 0.0
    %247 = vmatpush1.msra.mxu0 0.0
    %248 = vmatprep.subr.mxu0 0.0
    %249 = vmatpush1.msra.mxu0 0.0
    %250 = vmatprep.subr.mxu0 0.0
    %251 = vmatpush1.msra.mxu0 0.0
    %252 = vmatprep.subr.mxu0 0.0
    %253 = vmatpush1.msra.mxu0 0.0
    %254 = vmatprep.subr.mxu0 0.0
    %255 = vmatpush1.msra.mxu0 0.0
    %256 = vmatprep.subr.mxu0 0.0
    %257 = vmatpush1.msra.mxu0 0.0
    %258 = vmatprep.subr.mxu0 0.0
    %259 = vmatpush1.msra.mxu0 0.0
    %260 = vmatprep.subr.mxu0 0.0
    %261 = vmatpush1.msra.mxu0 0.0
    %262 = vmatprep.subr.mxu0 0.0
    %263 = vmatpush1.msra.mxu0 0.0
    %264 = vmatprep.mubr.f32.mxu0 0.0
    %265 = vmatmul.mubr.f32.gmra.mrb[0].mxu0 %v63
    %v266 = vpop.f32.mrb[0].mxu0
    %v267 = vadd.f32 %v125, %v266
    %v268 = vpop.f32.mrb[0].mxu0
    %269 = vdwg.mxu0
    %270 = vst [vmem:[#allocation2] sm:$0xff] %v196
    %271 = vst [vmem:[#allocation2 + $0x8] sm:$0xff] %v198
    %272 = vst [vmem:[#allocation2 + $0x10] sm:$0xff] %v267
    %v273 = vld [vmem:[%s1] sm:$0x1]
    %v274 = vld [vmem:[#allocation8] sm:$0xff]
    %v275 = vld [vmem:[#allocation8 + $0x8] sm:$0xff]
    %v276 = vld [vmem:[#allocation8 + $0x10] sm:$0xff]
    %v277 = vld [vmem:[#allocation8 + $0x18] sm:$0xff]
    %v278 = vld [vmem:[#allocation8 + $0x20] sm:$0xff]
    %v279 = vld [vmem:[#allocation8 + $0x28] sm:$0xff]
    %v280 = vld [vmem:[#allocation8 + $0x30] sm:$0xff]
    %v281 = vld [vmem:[#allocation8 + $0x38] sm:$0xff]
    %v282 = vld [vmem:[#allocation8 + $0x40] sm:$0xff]
    %v283 = vld [vmem:[#allocation8 + $0x48] sm:$0xff]
    %v284 = vld [vmem:[#allocation8 + $0x50] sm:$0xff]
    %v285 = vld [vmem:[#allocation8 + $0x58] sm:$0xff]
    %v286 = vld [vmem:[#allocation8 + $0x60] sm:$0xff]
    %v287 = vld [vmem:[#allocation8 + $0x68] sm:$0xff]
    %v288 = vld [vmem:[#allocation8 + $0x70] sm:$0xff]
    %v289 = vld [vmem:[#allocation8 + $0x78] sm:$0xff]
    %v290 = vld [vmem:[#allocation8 + $0x80] sm:$0xff]
    %v291 = vld [vmem:[#allocation8 + $0x88] sm:$0xff]
    %v292 = vld [vmem:[#allocation8 + $0x90] sm:$0xff]
    %v293 = vld [vmem:[#allocation8 + $0x98] sm:$0xff]
    %v294 = vld [vmem:[#allocation8 + $0xa0] sm:$0xff]
    %v295 = vld [vmem:[#allocation8 + $0xa8] sm:$0xff]
    %v296 = vld [vmem:[#allocation8 + $0xb0] sm:$0xff]
    %v297 = vld [vmem:[#allocation8 + $0xb8] sm:$0xff]
    %v298 = vld [vmem:[#allocation8 + $0xc0] sm:$0xff]
    %v299 = vld [vmem:[#allocation8 + $0xc8] sm:$0xff]
    %v300 = vld [vmem:[#allocation8 + $0xd0] sm:$0xff]
    %v301 = vld [vmem:[#allocation8 + $0xd8] sm:$0xff]
    %v302 = vld [vmem:[#allocation8 + $0xe0] sm:$0xff]
    %v303 = vld [vmem:[#allocation8 + $0xe8] sm:$0xff]
    %v304 = vld [vmem:[#allocation8 + $0xf0] sm:$0xff]
    %v305 = vld [vmem:[#allocation8 + $0xf8] sm:$0xff]
    %v306 = vld [vmem:[#allocation8 + $0x100] sm:$0xff]
    %v307 = vld [vmem:[#allocation8 + $0x108] sm:$0xff]
    %v308 = vld [vmem:[#allocation8 + $0x110] sm:$0xff]
    %v309 = vld [vmem:[#allocation8 + $0x118] sm:$0xff]
    %v310 = vld [vmem:[#allocation8 + $0x120] sm:$0xff]
    %v311 = vld [vmem:[#allocation8 + $0x128] sm:$0xff]
    %v312 = vld [vmem:[#allocation8 + $0x130] sm:$0xff]
    %v313 = vld [vmem:[#allocation8 + $0x138] sm:$0xff]
    %v314 = vld [vmem:[#allocation8 + $0x140] sm:$0xff]
    %v315 = vld [vmem:[#allocation8 + $0x148] sm:$0xff]
    %v316 = vld [vmem:[#allocation8 + $0x150] sm:$0xff]
    %v317 = vld [vmem:[#allocation8 + $0x158] sm:$0xff]
    %v318 = vld [vmem:[#allocation8 + $0x160] sm:$0xff]
    %v319 = vld [vmem:[#allocation8 + $0x168] sm:$0xff]
    %v320 = vld [vmem:[#allocation8 + $0x170] sm:$0xff]
    %v321 = vld [vmem:[#allocation8 + $0x178] sm:$0xff]
    %v322 = vld [vmem:[%s5] sm:$0x7]
    %v324 = vlaneseq
    %v325 = vshrl.u32 %v324, 7
    %v326 = vsub.s32 0, %v325
    %v327 = vrot.slane %v322, %v326
    %v328 = vlaneseq
    %v329 = vshrl.u32 %v328, 7
    %v330 = vsub.s32 1, %v329
    %v331 = vrot.slane %v322, %v330
    %v332 = vlaneseq
    %v333 = vshrl.u32 %v332, 7
    %v334 = vsub.s32 2, %v333
    %v335 = vrot.slane %v322, %v334
    %339 = vmatprep.subr.mxu0 %v275
    %340 = vmatpush1.msra.mxu0 %v274
    %341 = vmatprep.subr.mxu0 %v278
    %342 = vmatpush1.msra.mxu0 %v277
    %343 = vmatprep.subr.mxu0 %v281
    %344 = vmatpush1.msra.mxu0 %v280
    %345 = vmatprep.subr.mxu0 %v284
    %346 = vmatpush1.msra.mxu0 %v283
    %347 = vmatprep.subr.mxu0 %v287
    %348 = vmatpush1.msra.mxu0 %v286
    %349 = vmatprep.subr.mxu0 %v290
    %350 = vmatpush1.msra.mxu0 %v289
    %351 = vmatprep.subr.mxu0 %v293
    %352 = vmatpush1.msra.mxu0 %v292
    %353 = vmatprep.subr.mxu0 %v296
    %354 = vmatpush1.msra.mxu0 %v295
    %355 = vmatprep.subr.mxu0 %v299
    %356 = vmatpush1.msra.mxu0 %v298
    %357 = vmatprep.subr.mxu0 %v302
    %358 = vmatpush1.msra.mxu0 %v301
    %359 = vmatprep.subr.mxu0 %v305
    %360 = vmatpush1.msra.mxu0 %v304
    %361 = vmatprep.subr.mxu0 %v308
    %362 = vmatpush1.msra.mxu0 %v307
    %363 = vmatprep.subr.mxu0 %v311
    %364 = vmatpush1.msra.mxu0 %v310
    %365 = vmatprep.subr.mxu0 %v314
    %366 = vmatpush1.msra.mxu0 %v313
    %367 = vmatprep.subr.mxu0 %v317
    %368 = vmatpush1.msra.mxu0 %v316
    %369 = vmatprep.subr.mxu0 %v320
    %370 = vmatpush1.msra.mxu0 %v319
    %371 = vmatprep.subr.mxu0 0.0
    %372 = vmatpush1.msra.mxu0 0.0
    %373 = vmatprep.subr.mxu0 0.0
    %374 = vmatpush1.msra.mxu0 0.0
    %375 = vmatprep.subr.mxu0 0.0
    %376 = vmatpush1.msra.mxu0 0.0
    %377 = vmatprep.subr.mxu0 0.0
    %378 = vmatpush1.msra.mxu0 0.0
    %379 = vmatprep.subr.mxu0 0.0
    %380 = vmatpush1.msra.mxu0 0.0
    %381 = vmatprep.subr.mxu0 0.0
    %382 = vmatpush1.msra.mxu0 0.0
    %383 = vmatprep.subr.mxu0 0.0
    %384 = vmatpush1.msra.mxu0 0.0
    %385 = vmatprep.subr.mxu0 0.0
    %386 = vmatpush1.msra.mxu0 0.0
    %387 = vmatprep.subr.mxu0 0.0
    %388 = vmatpush1.msra.mxu0 0.0
    %389 = vmatprep.subr.mxu0 0.0
    %390 = vmatpush1.msra.mxu0 0.0
    %391 = vmatprep.subr.mxu0 0.0
    %392 = vmatpush1.msra.mxu0 0.0
    %393 = vmatprep.subr.mxu0 0.0
    %394 = vmatpush1.msra.mxu0 0.0
    %395 = vmatprep.subr.mxu0 0.0
    %396 = vmatpush1.msra.mxu0 0.0
    %397 = vmatprep.subr.mxu0 0.0
    %398 = vmatpush1.msra.mxu0 0.0
    %399 = vmatprep.subr.mxu0 0.0
    %400 = vmatpush1.msra.mxu0 0.0
    %401 = vmatprep.subr.mxu0 0.0
    %402 = vmatpush1.msra.mxu0 0.0
    %403 = vmatprep.mubr.f32.mxu0 0.0
    %404 = vmatmul.mubr.f32.gmra.mrb[0].mxu0 %v273
    %v405 = vpop.f32.mrb[0].mxu0
    %v406 = vadd.f32 %v327, %v405
    %v407 = vpop.f32.mrb[0].mxu0
    %v408 = vadd.f32 %v331, %v407
    %409 = vdwg.mxu0
    %410 = vmatprep.subr.mxu0 0.0
    %411 = vmatpush1.msra.mxu0 %v276
    %412 = vmatprep.subr.mxu0 0.0
    %413 = vmatpush1.msra.mxu0 %v279
    %414 = vmatprep.subr.mxu0 0.0
    %415 = vmatpush1.msra.mxu0 %v282
    %416 = vmatprep.subr.mxu0 0.0
    %417 = vmatpush1.msra.mxu0 %v285
    %418 = vmatprep.subr.mxu0 0.0
    %419 = vmatpush1.msra.mxu0 %v288
    %420 = vmatprep.subr.mxu0 0.0
    %421 = vmatpush1.msra.mxu0 %v291
    %422 = vmatprep.subr.mxu0 0.0
    %423 = vmatpush1.msra.mxu0 %v294
    %424 = vmatprep.subr.mxu0 0.0
    %425 = vmatpush1.msra.mxu0 %v297
    %426 = vmatprep.subr.mxu0 0.0
    %427 = vmatpush1.msra.mxu0 %v300
    %428 = vmatprep.subr.mxu0 0.0
    %429 = vmatpush1.msra.mxu0 %v303
    %430 = vmatprep.subr.mxu0 0.0
    %431 = vmatpush1.msra.mxu0 %v306
    %432 = vmatprep.subr.mxu0 0.0
    %433 = vmatpush1.msra.mxu0 %v309
    %434 = vmatprep.subr.mxu0 0.0
    %435 = vmatpush1.msra.mxu0 %v312
    %436 = vmatprep.subr.mxu0 0.0
    %437 = vmatpush1.msra.mxu0 %v315
    %438 = vmatprep.subr.mxu0 0.0
    %439 = vmatpush1.msra.mxu0 %v318
    %440 = vmatprep.subr.mxu0 0.0
    %441 = vmatpush1.msra.mxu0 %v321
    %442 = vmatprep.subr.mxu0 0.0
    %443 = vmatpush1.msra.mxu0 0.0
    %444 = vmatprep.subr.mxu0 0.0
    %445 = vmatpush1.msra.mxu0 0.0
    %446 = vmatprep.subr.mxu0 0.0
    %447 = vmatpush1.msra.mxu0 0.0
    %448 = vmatprep.subr.mxu0 0.0
    %449 = vmatpush1.msra.mxu0 0.0
    %450 = vmatprep.subr.mxu0 0.0
    %451 = vmatpush1.msra.mxu0 0.0
    %452 = vmatprep.subr.mxu0 0.0
    %453 = vmatpush1.msra.mxu0 0.0
    %454 = vmatprep.subr.mxu0 0.0
    %455 = vmatpush1.msra.mxu0 0.0
    %456 = vmatprep.subr.mxu0 0.0
    %457 = vmatpush1.msra.mxu0 0.0
    %458 = vmatprep.subr.mxu0 0.0
    %459 = vmatpush1.msra.mxu0 0.0
    %460 = vmatprep.subr.mxu0 0.0
    %461 = vmatpush1.msra.mxu0 0.0
    %462 = vmatprep.subr.mxu0 0.0
    %463 = vmatpush1.msra.mxu0 0.0
    %464 = vmatprep.subr.mxu0 0.0
    %465 = vmatpush1.msra.mxu0 0.0
    %466 = vmatprep.subr.mxu0 0.0
    %467 = vmatpush1.msra.mxu0 0.0
    %468 = vmatprep.subr.mxu0 0.0
    %469 = vmatpush1.msra.mxu0 0.0
    %470 = vmatprep.subr.mxu0 0.0
    %471 = vmatpush1.msra.mxu0 0.0
    %472 = vmatprep.subr.mxu0 0.0
    %473 = vmatpush1.msra.mxu0 0.0
    %474 = vmatprep.mubr.f32.mxu0 0.0
    %475 = vmatmul.mubr.f32.gmra.mrb[0].mxu0 %v273
    %v476 = vpop.f32.mrb[0].mxu0
    %v477 = vadd.f32 %v335, %v476
    %v478 = vpop.f32.mrb[0].mxu0
    %479 = vdwg.mxu0
    %v480 = vld [vmem:[#allocation2] ss:$8 sm:$0x7]
    %v481 = vadd.f32 %v480, %v406
    %v482 = vxor.u32 %v481, 2147483648
    %v483 = vmul.f32 %v482, 1.442695
    %v484 = vpow.pop %v483
    %v485 = vadd.f32 %v484, 1.0
    %v486 = vrcp.pop %v485
    %v487 = vmul.f32 1.0, %v486
    %v489 = vrot.slane %v480, 1
    %v491 = vadd.f32 %v489, %v408
    %v492 = vxor.u32 %v491, 2147483648
    %v493 = vmul.f32 %v492, 1.442695
    %v494 = vpow.pop %v493
    %v495 = vadd.f32 %v494, 1.0
    %v496 = vrcp.pop %v495
    %v497 = vmul.f32 1.0, %v496
    %v498 = vmul.f32 %v487, %v477
    %v499 = vrot.slane %v480, 2
    %v501 = vadd.f32 %v499, %v498
    %v502 = vtanh.pop %v501
    %v503 = vsub.f32 1.0, %v497
    %v504 = vmul.f32 %v503, %v502
    %v505 = vmul.f32 %v497, %v273
    %v506 = vadd.f32 %v504, %v505
    %507 = vst [vmem:[#allocation9] sm:$0x1] %v506
    %v508 = vld [vmem:[#allocation8] sm:$0xff]
    %v509 = vld [vmem:[#allocation8 + $0x8] sm:$0xff]
    %v510 = vld [vmem:[#allocation8 + $0x10] sm:$0xff]
    %v511 = vld [vmem:[#allocation8 + $0x18] sm:$0xff]
    %v512 = vld [vmem:[#allocation8 + $0x20] sm:$0xff]
    %v513 = vld [vmem:[#allocation8 + $0x28] sm:$0xff]
    %v514 = vld [vmem:[#allocation8 + $0x30] sm:$0xff]
    %v515 = vld [vmem:[#allocation8 + $0x38] sm:$0xff]
    %v516 = vld [vmem:[#allocation8 + $0x40] sm:$0xff]
    %v517 = vld [vmem:[#allocation8 + $0x48] sm:$0xff]
    %v518 = vld [vmem:[#allocation8 + $0x50] sm:$0xff]
    %v519 = vld [vmem:[#allocation8 + $0x58] sm:$0xff]
    %v520 = vld [vmem:[#allocation8 + $0x60] sm:$0xff]
    %v521 = vld [vmem:[#allocation8 + $0x68] sm:$0xff]
    %v522 = vld [vmem:[#allocation8 + $0x70] sm:$0xff]
    %v523 = vld [vmem:[#allocation8 + $0x78] sm:$0xff]
    %v524 = vld [vmem:[#allocation8 + $0x80] sm:$0xff]
    %v525 = vld [vmem:[#allocation8 + $0x88] sm:$0xff]
    %v526 = vld [vmem:[#allocation8 + $0x90] sm:$0xff]
    %v527 = vld [vmem:[#allocation8 + $0x98] sm:$0xff]
    %v528 = vld [vmem:[#allocation8 + $0xa0] sm:$0xff]
    %v529 = vld [vmem:[#allocation8 + $0xa8] sm:$0xff]
    %v530 = vld [vmem:[#allocation8 + $0xb0] sm:$0xff]
    %v531 = vld [vmem:[#allocation8 + $0xb8] sm:$0xff]
    %v532 = vld [vmem:[#allocation8 + $0xc0] sm:$0xff]
    %v533 = vld [vmem:[#allocation8 + $0xc8] sm:$0xff]
    %v534 = vld [vmem:[#allocation8 + $0xd0] sm:$0xff]
    %v535 = vld [vmem:[#allocation8 + $0xd8] sm:$0xff]
    %v536 = vld [vmem:[#allocation8 + $0xe0] sm:$0xff]
    %v537 = vld [vmem:[#allocation8 + $0xe8] sm:$0xff]
    %v538 = vld [vmem:[#allocation8 + $0xf0] sm:$0xff]
    %v539 = vld [vmem:[#allocation8 + $0xf8] sm:$0xff]
    %v540 = vld [vmem:[#allocation8 + $0x100] sm:$0xff]
    %v541 = vld [vmem:[#allocation8 + $0x108] sm:$0xff]
    %v542 = vld [vmem:[#allocation8 + $0x110] sm:$0xff]
    %v543 = vld [vmem:[#allocation8 + $0x118] sm:$0xff]
    %v544 = vld [vmem:[#allocation8 + $0x120] sm:$0xff]
    %v545 = vld [vmem:[#allocation8 + $0x128] sm:$0xff]
    %v546 = vld [vmem:[#allocation8 + $0x130] sm:$0xff]
    %v547 = vld [vmem:[#allocation8 + $0x138] sm:$0xff]
    %v548 = vld [vmem:[#allocation8 + $0x140] sm:$0xff]
    %v549 = vld [vmem:[#allocation8 + $0x148] sm:$0xff]
    %v550 = vld [vmem:[#allocation8 + $0x150] sm:$0xff]
    %v551 = vld [vmem:[#allocation8 + $0x158] sm:$0xff]
    %v552 = vld [vmem:[#allocation8 + $0x160] sm:$0xff]
    %v553 = vld [vmem:[#allocation8 + $0x168] sm:$0xff]
    %v554 = vld [vmem:[#allocation8 + $0x170] sm:$0xff]
    %v555 = vld [vmem:[#allocation8 + $0x178] sm:$0xff]
    %v556 = vld [vmem:[%s5] sm:$0x7]
    %v558 = vlaneseq
    %v559 = vshrl.u32 %v558, 7
    %v560 = vsub.s32 0, %v559
    %v561 = vrot.slane %v556, %v560
    %v562 = vlaneseq
    %v563 = vshrl.u32 %v562, 7
    %v564 = vsub.s32 1, %v563
    %v565 = vrot.slane %v556, %v564
    %v566 = vlaneseq
    %v567 = vshrl.u32 %v566, 7
    %v568 = vsub.s32 2, %v567
    %v569 = vrot.slane %v556, %v568
    %573 = vmatprep.subr.mxu0 %v509
    %574 = vmatpush1.msra.mxu0 %v508
    %575 = vmatprep.subr.mxu0 %v512
    %576 = vmatpush1.msra.mxu0 %v511
    %577 = vmatprep.subr.mxu0 %v515
    %578 = vmatpush1.msra.mxu0 %v514
    %579 = vmatprep.subr.mxu0 %v518
    %580 = vmatpush1.msra.mxu0 %v517
    %581 = vmatprep.subr.mxu0 %v521
    %582 = vmatpush1.msra.mxu0 %v520
    %583 = vmatprep.subr.mxu0 %v524
    %584 = vmatpush1.msra.mxu0 %v523
    %585 = vmatprep.subr.mxu0 %v527
    %586 = vmatpush1.msra.mxu0 %v526
    %587 = vmatprep.subr.mxu0 %v530
    %588 = vmatpush1.msra.mxu0 %v529
    %589 = vmatprep.subr.mxu0 %v533
    %590 = vmatpush1.msra.mxu0 %v532
    %591 = vmatprep.subr.mxu0 %v536
    %592 = vmatpush1.msra.mxu0 %v535
    %593 = vmatprep.subr.mxu0 %v539
    %594 = vmatpush1.msra.mxu0 %v538
    %595 = vmatprep.subr.mxu0 %v542
    %596 = vmatpush1.msra.mxu0 %v541
    %597 = vmatprep.subr.mxu0 %v545
    %598 = vmatpush1.msra.mxu0 %v544
    %599 = vmatprep.subr.mxu0 %v548
    %600 = vmatpush1.msra.mxu0 %v547
    %601 = vmatprep.subr.mxu0 %v551
    %602 = vmatpush1.msra.mxu0 %v550
    %603 = vmatprep.subr.mxu0 %v554
    %604 = vmatpush1.msra.mxu0 %v553
    %605 = vmatprep.subr.mxu0 0.0
    %606 = vmatpush1.msra.mxu0 0.0
    %607 = vmatprep.subr.mxu0 0.0
    %608 = vmatpush1.msra.mxu0 0.0
    %609 = vmatprep.subr.mxu0 0.0
    %610 = vmatpush1.msra.mxu0 0.0
    %611 = vmatprep.subr.mxu0 0.0
    %612 = vmatpush1.msra.mxu0 0.0
    %613 = vmatprep.subr.mxu0 0.0
    %614 = vmatpush1.msra.mxu0 0.0
    %615 = vmatprep.subr.mxu0 0.0
    %616 = vmatpush1.msra.mxu0 0.0
    %617 = vmatprep.subr.mxu0 0.0
    %618 = vmatpush1.msra.mxu0 0.0
    %619 = vmatprep.subr.mxu0 0.0
    %620 = vmatpush1.msra.mxu0 0.0
    %621 = vmatprep.subr.mxu0 0.0
    %622 = vmatpush1.msra.mxu0 0.0
    %623 = vmatprep.subr.mxu0 0.0
    %624 = vmatpush1.msra.mxu0 0.0
    %625 = vmatprep.subr.mxu0 0.0
    %626 = vmatpush1.msra.mxu0 0.0
    %627 = vmatprep.subr.mxu0 0.0
    %628 = vmatpush1.msra.mxu0 0.0
    %629 = vmatprep.subr.mxu0 0.0
    %630 = vmatpush1.msra.mxu0 0.0
    %631 = vmatprep.subr.mxu0 0.0
    %632 = vmatpush1.msra.mxu0 0.0
    %633 = vmatprep.subr.mxu0 0.0
    %634 = vmatpush1.msra.mxu0 0.0
    %635 = vmatprep.subr.mxu0 0.0
    %636 = vmatpush1.msra.mxu0 0.0
    %637 = vmatprep.mubr.f32.mxu0 0.0
    %638 = vmatmul.mubr.f32.gmra.mrb[0].mxu0 %v506
    %v639 = vpop.f32.mrb[0].mxu0
    %v640 = vadd.f32 %v561, %v639
    %v641 = vpop.f32.mrb[0].mxu0
    %v642 = vadd.f32 %v565, %v641
    %643 = vdwg.mxu0
    %644 = vmatprep.subr.mxu0 0.0
    %645 = vmatpush1.msra.mxu0 %v510
    %646 = vmatprep.subr.mxu0 0.0
    %647 = vmatpush1.msra.mxu0 %v513
    %648 = vmatprep.subr.mxu0 0.0
    %649 = vmatpush1.msra.mxu0 %v516
    %650 = vmatprep.subr.mxu0 0.0
    %651 = vmatpush1.msra.mxu0 %v519
    %652 = vmatprep.subr.mxu0 0.0
    %653 = vmatpush1.msra.mxu0 %v522
    %654 = vmatprep.subr.mxu0 0.0
    %655 = vmatpush1.msra.mxu0 %v525
    %656 = vmatprep.subr.mxu0 0.0
    %657 = vmatpush1.msra.mxu0 %v528
    %658 = vmatprep.subr.mxu0 0.0
    %659 = vmatpush1.msra.mxu0 %v531
    %660 = vmatprep.subr.mxu0 0.0
    %661 = vmatpush1.msra.mxu0 %v534
    %662 = vmatprep.subr.mxu0 0.0
    %663 = vmatpush1.msra.mxu0 %v537
    %664 = vmatprep.subr.mxu0 0.0
    %665 = vmatpush1.msra.mxu0 %v540
    %666 = vmatprep.subr.mxu0 0.0
    %667 = vmatpush1.msra.mxu0 %v543
    %668 = vmatprep.subr.mxu0 0.0
    %669 = vmatpush1.msra.mxu0 %v546
    %670 = vmatprep.subr.mxu0 0.0
    %671 = vmatpush1.msra.mxu0 %v549
    %672 = vmatprep.subr.mxu0 0.0
    %673 = vmatpush1.msra.mxu0 %v552
    %674 = vmatprep.subr.mxu0 0.0
    %675 = vmatpush1.msra.mxu0 %v555
    %676 = vmatprep.subr.mxu0 0.0
    %677 = vmatpush1.msra.mxu0 0.0
    %678 = vmatprep.subr.mxu0 0.0
    %679 = vmatpush1.msra.mxu0 0.0
    %680 = vmatprep.subr.mxu0 0.0
    %681 = vmatpush1.msra.mxu0 0.0
    %682 = vmatprep.subr.mxu0 0.0
    %683 = vmatpush1.msra.mxu0 0.0
    %684 = vmatprep.subr.mxu0 0.0
    %685 = vmatpush1.msra.mxu0 0.0
    %686 = vmatprep.subr.mxu0 0.0
    %687 = vmatpush1.msra.mxu0 0.0
    %688 = vmatprep.subr.mxu0 0.0
    %689 = vmatpush1.msra.mxu0 0.0
    %690 = vmatprep.subr.mxu0 0.0
    %691 = vmatpush1.msra.mxu0 0.0
    %692 = vmatprep.subr.mxu0 0.0
    %693 = vmatpush1.msra.mxu0 0.0
    %694 = vmatprep.subr.mxu0 0.0
    %695 = vmatpush1.msra.mxu0 0.0
    %696 = vmatprep.subr.mxu0 0.0
    %697 = vmatpush1.msra.mxu0 0.0
    %698 = vmatprep.subr.mxu0 0.0
    %699 = vmatpush1.msra.mxu0 0.0
    %700 = vmatprep.subr.mxu0 0.0
    %701 = vmatpush1.msra.mxu0 0.0
    %702 = vmatprep.subr.mxu0 0.0
    %703 = vmatpush1.msra.mxu0 0.0
    %704 = vmatprep.subr.mxu0 0.0
    %705 = vmatpush1.msra.mxu0 0.0
    %706 = vmatprep.subr.mxu0 0.0
    %707 = vmatpush1.msra.mxu0 0.0
    %708 = vmatprep.mubr.f32.mxu0 0.0
    %709 = vmatmul.mubr.f32.gmra.mrb[0].mxu0 %v506
    %v710 = vpop.f32.mrb[0].mxu0
    %v711 = vadd.f32 %v569, %v710
    %v712 = vpop.f32.mrb[0].mxu0
    %713 = vdwg.mxu0
    %s714 = scalar_lea.vmem [#allocation2], 1
    %v715 = vld [vmem:[%s714] ss:$8 sm:$0x7]
    %v716 = vadd.f32 %v715, %v640
    %v717 = vxor.u32 %v716, 2147483648
    %v718 = vmul.f32 %v717, 1.442695
    %v719 = vpow.pop %v718
    %v720 = vadd.f32 %v719, 1.0
    %v721 = vrcp.pop %v720
    %v722 = vmul.f32 1.0, %v721
    %v724 = vrot.slane %v715, 1
    %v726 = vadd.f32 %v724, %v642
    %v727 = vxor.u32 %v726, 2147483648
    %v728 = vmul.f32 %v727, 1.442695
    %v729 = vpow.pop %v728
    %v730 = vadd.f32 %v729, 1.0
    %v731 = vrcp.pop %v730
    %v732 = vmul.f32 1.0, %v731
    %v733 = vmul.f32 %v722, %v711
    %v734 = vrot.slane %v715, 2
    %v736 = vadd.f32 %v734, %v733
    %v737 = vtanh.pop %v736
    %v738 = vsub.f32 1.0, %v732
    %v739 = vmul.f32 %v738, %v737
    %v740 = vmul.f32 %v732, %v506
    %v741 = vadd.f32 %v739, %v740
    %742 = vst [vmem:[#allocation9 + $0x1] sm:$0x1] %v741
    %v743 = vld [vmem:[#allocation8] sm:$0xff]
    %v744 = vld [vmem:[#allocation8 + $0x8] sm:$0xff]
    %v745 = vld [vmem:[#allocation8 + $0x10] sm:$0xff]
    %v746 = vld [vmem:[#allocation8 + $0x18] sm:$0xff]
    %v747 = vld [vmem:[#allocation8 + $0x20] sm:$0xff]
    %v748 = vld [vmem:[#allocation8 + $0x28] sm:$0xff]
    %v749 = vld [vmem:[#allocation8 + $0x30] sm:$0xff]
    %v750 = vld [vmem:[#allocation8 + $0x38] sm:$0xff]
    %v751 = vld [vmem:[#allocation8 + $0x40] sm:$0xff]
    %v752 = vld [vmem:[#allocation8 + $0x48] sm:$0xff]
    %v753 = vld [vmem:[#allocation8 + $0x50] sm:$0xff]
    %v754 = vld [vmem:[#allocation8 + $0x58] sm:$0xff]
    %v755 = vld [vmem:[#allocation8 + $0x60] sm:$0xff]
    %v756 = vld [vmem:[#allocation8 + $0x68] sm:$0xff]
    %v757 = vld [vmem:[#allocation8 + $0x70] sm:$0xff]
    %v758 = vld [vmem:[#allocation8 + $0x78] sm:$0xff]
    %v759 = vld [vmem:[#allocation8 + $0x80] sm:$0xff]
    %v760 = vld [vmem:[#allocation8 + $0x88] sm:$0xff]
    %v761 = vld [vmem:[#allocation8 + $0x90] sm:$0xff]
    %v762 = vld [vmem:[#allocation8 + $0x98] sm:$0xff]
    %v763 = vld [vmem:[#allocation8 + $0xa0] sm:$0xff]
    %v764 = vld [vmem:[#allocation8 + $0xa8] sm:$0xff]
    %v765 = vld [vmem:[#allocation8 + $0xb0] sm:$0xff]
    %v766 = vld [vmem:[#allocation8 + $0xb8] sm:$0xff]
    %v767 = vld [vmem:[#allocation8 + $0xc0] sm:$0xff]
    %v768 = vld [vmem:[#allocation8 + $0xc8] sm:$0xff]
    %v769 = vld [vmem:[#allocation8 + $0xd0] sm:$0xff]
    %v770 = vld [vmem:[#allocation8 + $0xd8] sm:$0xff]
    %v771 = vld [vmem:[#allocation8 + $0xe0] sm:$0xff]
    %v772 = vld [vmem:[#allocation8 + $0xe8] sm:$0xff]
    %v773 = vld [vmem:[#allocation8 + $0xf0] sm:$0xff]
    %v774 = vld [vmem:[#allocation8 + $0xf8] sm:$0xff]
    %v775 = vld [vmem:[#allocation8 + $0x100] sm:$0xff]
    %v776 = vld [vmem:[#allocation8 + $0x108] sm:$0xff]
    %v777 = vld [vmem:[#allocation8 + $0x110] sm:$0xff]
    %v778 = vld [vmem:[#allocation8 + $0x118] sm:$0xff]
    %v779 = vld [vmem:[#allocation8 + $0x120] sm:$0xff]
    %v780 = vld [vmem:[#allocation8 + $0x128] sm:$0xff]
    %v781 = vld [vmem:[#allocation8 + $0x130] sm:$0xff]
    %v782 = vld [vmem:[#allocation8 + $0x138] sm:$0xff]
    %v783 = vld [vmem:[#allocation8 + $0x140] sm:$0xff]
    %v784 = vld [vmem:[#allocation8 + $0x148] sm:$0xff]
    %v785 = vld [vmem:[#allocation8 + $0x150] sm:$0xff]
    %v786 = vld [vmem:[#allocation8 + $0x158] sm:$0xff]
    %v787 = vld [vmem:[#allocation8 + $0x160] sm:$0xff]
    %v788 = vld [vmem:[#allocation8 + $0x168] sm:$0xff]
    %v789 = vld [vmem:[#allocation8 + $0x170] sm:$0xff]
    %v790 = vld [vmem:[#allocation8 + $0x178] sm:$0xff]
    %v791 = vld [vmem:[%s5] sm:$0x7]
    %v793 = vlaneseq
    %v794 = vshrl.u32 %v793, 7
    %v795 = vsub.s32 0, %v794
    %v796 = vrot.slane %v791, %v795
    %v797 = vlaneseq
    %v798 = vshrl.u32 %v797, 7
    %v799 = vsub.s32 1, %v798
    %v800 = vrot.slane %v791, %v799
    %v801 = vlaneseq
    %v802 = vshrl.u32 %v801, 7
    %v803 = vsub.s32 2, %v802
    %v804 = vrot.slane %v791, %v803
    %808 = vmatprep.subr.mxu0 %v744
    %809 = vmatpush1.msra.mxu0 %v743
    %810 = vmatprep.subr.mxu0 %v747
    %811 = vmatpush1.msra.mxu0 %v746
    %812 = vmatprep.subr.mxu0 %v750
    %813 = vmatpush1.msra.mxu0 %v749
    %814 = vmatprep.subr.mxu0 %v753
    %815 = vmatpush1.msra.mxu0 %v752
    %816 = vmatprep.subr.mxu0 %v756
    %817 = vmatpush1.msra.mxu0 %v755
    %818 = vmatprep.subr.mxu0 %v759
    %819 = vmatpush1.msra.mxu0 %v758
    %820 = vmatprep.subr.mxu0 %v762
    %821 = vmatpush1.msra.mxu0 %v761
    %822 = vmatprep.subr.mxu0 %v765
    %823 = vmatpush1.msra.mxu0 %v764
    %824 = vmatprep.subr.mxu0 %v768
    %825 = vmatpush1.msra.mxu0 %v767
    %826 = vmatprep.subr.mxu0 %v771
    %827 = vmatpush1.msra.mxu0 %v770
    %828 = vmatprep.subr.mxu0 %v774
    %829 = vmatpush1.msra.mxu0 %v773
    %830 = vmatprep.subr.mxu0 %v777
    %831 = vmatpush1.msra.mxu0 %v776
    %832 = vmatprep.subr.mxu0 %v780
    %833 = vmatpush1.msra.mxu0 %v779
    %834 = vmatprep.subr.mxu0 %v783
    %835 = vmatpush1.msra.mxu0 %v782
    %836 = vmatprep.subr.mxu0 %v786
    %837 = vmatpush1.msra.mxu0 %v785
    %838 = vmatprep.subr.mxu0 %v789
    %839 = vmatpush1.msra.mxu0 %v788
    %840 = vmatprep.subr.mxu0 0.0
    %841 = vmatpush1.msra.mxu0 0.0
    %842 = vmatprep.subr.mxu0 0.0
    %843 = vmatpush1.msra.mxu0 0.0
    %844 = vmatprep.subr.mxu0 0.0
    %845 = vmatpush1.msra.mxu0 0.0
    %846 = vmatprep.subr.mxu0 0.0
    %847 = vmatpush1.msra.mxu0 0.0
    %848 = vmatprep.subr.mxu0 0.0
    %849 = vmatpush1.msra.mxu0 0.0
    %850 = vmatprep.subr.mxu0 0.0
    %851 = vmatpush1.msra.mxu0 0.0
    %852 = vmatprep.subr.mxu0 0.0
    %853 = vmatpush1.msra.mxu0 0.0
    %854 = vmatprep.subr.mxu0 0.0
    %855 = vmatpush1.msra.mxu0 0.0
    %856 = vmatprep.subr.mxu0 0.0
    %857 = vmatpush1.msra.mxu0 0.0
    %858 = vmatprep.subr.mxu0 0.0
    %859 = vmatpush1.msra.mxu0 0.0
    %860 = vmatprep.subr.mxu0 0.0
    %861 = vmatpush1.msra.mxu0 0.0
    %862 = vmatprep.subr.mxu0 0.0
    %863 = vmatpush1.msra.mxu0 0.0
    %864 = vmatprep.subr.mxu0 0.0
    %865 = vmatpush1.msra.mxu0 0.0
    %866 = vmatprep.subr.mxu0 0.0
    %867 = vmatpush1.msra.mxu0 0.0
    %868 = vmatprep.subr.mxu0 0.0
    %869 = vmatpush1.msra.mxu0 0.0
    %870 = vmatprep.subr.mxu0 0.0
    %871 = vmatpush1.msra.mxu0 0.0
    %872 = vmatprep.mubr.f32.mxu0 0.0
    %873 = vmatmul.mubr.f32.gmra.mrb[0].mxu0 %v741
    %v874 = vpop.f32.mrb[0].mxu0
    %v875 = vadd.f32 %v796, %v874
    %v876 = vpop.f32.mrb[0].mxu0
    %v877 = vadd.f32 %v800, %v876
    %878 = vdwg.mxu0
    %879 = vmatprep.subr.mxu0 0.0
    %880 = vmatpush1.msra.mxu0 %v745
    %881 = vmatprep.subr.mxu0 0.0
    %882 = vmatpush1.msra.mxu0 %v748
    %883 = vmatprep.subr.mxu0 0.0
    %884 = vmatpush1.msra.mxu0 %v751
    %885 = vmatprep.subr.mxu0 0.0
    %886 = vmatpush1.msra.mxu0 %v754
    %887 = vmatprep.subr.mxu0 0.0
    %888 = vmatpush1.msra.mxu0 %v757
    %889 = vmatprep.subr.mxu0 0.0
    %890 = vmatpush1.msra.mxu0 %v760
    %891 = vmatprep.subr.mxu0 0.0
    %892 = vmatpush1.msra.mxu0 %v763
    %893 = vmatprep.subr.mxu0 0.0
    %894 = vmatpush1.msra.mxu0 %v766
    %895 = vmatprep.subr.mxu0 0.0
    %896 = vmatpush1.msra.mxu0 %v769
    %897 = vmatprep.subr.mxu0 0.0
    %898 = vmatpush1.msra.mxu0 %v772
    %899 = vmatprep.subr.mxu0 0.0
    %900 = vmatpush1.msra.mxu0 %v775
    %901 = vmatprep.subr.mxu0 0.0
    %902 = vmatpush1.msra.mxu0 %v778
    %903 = vmatprep.subr.mxu0 0.0
    %904 = vmatpush1.msra.mxu0 %v781
    %905 = vmatprep.subr.mxu0 0.0
    %906 = vmatpush1.msra.mxu0 %v784
    %907 = vmatprep.subr.mxu0 0.0
    %908 = vmatpush1.msra.mxu0 %v787
    %909 = vmatprep.subr.mxu0 0.0
    %910 = vmatpush1.msra.mxu0 %v790
    %911 = vmatprep.subr.mxu0 0.0
    %912 = vmatpush1.msra.mxu0 0.0
    %913 = vmatprep.subr.mxu0 0.0
    %914 = vmatpush1.msra.mxu0 0.0
    %915 = vmatprep.subr.mxu0 0.0
    %916 = vmatpush1.msra.mxu0 0.0
    %917 = vmatprep.subr.mxu0 0.0
    %918 = vmatpush1.msra.mxu0 0.0
    %919 = vmatprep.subr.mxu0 0.0
    %920 = vmatpush1.msra.mxu0 0.0
    %921 = vmatprep.subr.mxu0 0.0
    %922 = vmatpush1.msra.mxu0 0.0
    %923 = vmatprep.subr.mxu0 0.0
    %924 = vmatpush1.msra.mxu0 0.0
    %925 = vmatprep.subr.mxu0 0.0
    %926 = vmatpush1.msra.mxu0 0.0
    %927 = vmatprep.subr.mxu0 0.0
    %928 = vmatpush1.msra.mxu0 0.0
    %929 = vmatprep.subr.mxu0 0.0
    %930 = vmatpush1.msra.mxu0 0.0
    %931 = vmatprep.subr.mxu0 0.0
    %932 = vmatpush1.msra.mxu0 0.0
    %933 = vmatprep.subr.mxu0 0.0
    %934 = vmatpush1.msra.mxu0 0.0
    %935 = vmatprep.subr.mxu0 0.0
    %936 = vmatpush1.msra.mxu0 0.0
    %937 = vmatprep.subr.mxu0 0.0
    %938 = vmatpush1.msra.mxu0 0.0
    %939 = vmatprep.subr.mxu0 0.0
    %940 = vmatpush1.msra.mxu0 0.0
    %941 = vmatprep.subr.mxu0 0.0
    %942 = vmatpush1.msra.mxu0 0.0
    %943 = vmatprep.mubr.f32.mxu0 0.0
    %944 = vmatmul.mubr.f32.gmra.mrb[0].mxu0 %v741
    %v945 = vpop.f32.mrb[0].mxu0
    %v946 = vadd.f32 %v804, %v945
    %v947 = vpop.f32.mrb[0].mxu0
    %948 = vdwg.mxu0
    %s949 = scalar_lea.vmem [#allocation2], 2
    %v950 = vld [vmem:[%s949] ss:$8 sm:$0x7]
    %v951 = vadd.f32 %v950, %v875
    %v952 = vxor.u32 %v951, 2147483648
    %v953 = vmul.f32 %v952, 1.442695
    %v954 = vpow.pop %v953
    %v955 = vadd.f32 %v954, 1.0
    %v956 = vrcp.pop %v955
    %v957 = vmul.f32 1.0, %v956
    %v959 = vrot.slane %v950, 1
    %v961 = vadd.f32 %v959, %v877
    %v962 = vxor.u32 %v961, 2147483648
    %v963 = vmul.f32 %v962, 1.442695
    %v964 = vpow.pop %v963
    %v965 = vadd.f32 %v964, 1.0
    %v966 = vrcp.pop %v965
    %v967 = vmul.f32 1.0, %v966
    %v968 = vmul.f32 %v957, %v946
    %v969 = vrot.slane %v950, 2
    %v971 = vadd.f32 %v969, %v968
    %v972 = vtanh.pop %v971
    %v973 = vsub.f32 1.0, %v967
    %v974 = vmul.f32 %v973, %v972
    %v975 = vmul.f32 %v967, %v741
    %v976 = vadd.f32 %v974, %v975
    %977 = vst [vmem:[#allocation9 + $0x2] sm:$0x1] %v976
    %v978 = vld [vmem:[#allocation8] sm:$0xff]
    %v979 = vld [vmem:[#allocation8 + $0x8] sm:$0xff]
    %v980 = vld [vmem:[#allocation8 + $0x10] sm:$0xff]
    %v981 = vld [vmem:[#allocation8 + $0x18] sm:$0xff]
    %v982 = vld [vmem:[#allocation8 + $0x20] sm:$0xff]
    %v983 = vld [vmem:[#allocation8 + $0x28] sm:$0xff]
    %v984 = vld [vmem:[#allocation8 + $0x30] sm:$0xff]
    %v985 = vld [vmem:[#allocation8 + $0x38] sm:$0xff]
    %v986 = vld [vmem:[#allocation8 + $0x40] sm:$0xff]
    %v987 = vld [vmem:[#allocation8 + $0x48] sm:$0xff]
    %v988 = vld [vmem:[#allocation8 + $0x50] sm:$0xff]
    %v989 = vld [vmem:[#allocation8 + $0x58] sm:$0xff]
    %v990 = vld [vmem:[#allocation8 + $0x60] sm:$0xff]
    %v991 = vld [vmem:[#allocation8 + $0x68] sm:$0xff]
    %v992 = vld [vmem:[#allocation8 + $0x70] sm:$0xff]
    %v993 = vld [vmem:[#allocation8 + $0x78] sm:$0xff]
    %v994 = vld [vmem:[#allocation8 + $0x80] sm:$0xff]
    %v995 = vld [vmem:[#allocation8 + $0x88] sm:$0xff]
    %v996 = vld [vmem:[#allocation8 + $0x90] sm:$0xff]
    %v997 = vld [vmem:[#allocation8 + $0x98] sm:$0xff]
    %v998 = vld [vmem:[#allocation8 + $0xa0] sm:$0xff]
    %v999 = vld [vmem:[#allocation8 + $0xa8] sm:$0xff]
    %v1000 = vld [vmem:[#allocation8 + $0xb0] sm:$0xff]
    %v1001 = vld [vmem:[#allocation8 + $0xb8] sm:$0xff]
    %v1002 = vld [vmem:[#allocation8 + $0xc0] sm:$0xff]
    %v1003 = vld [vmem:[#allocation8 + $0xc8] sm:$0xff]
    %v1004 = vld [vmem:[#allocation8 + $0xd0] sm:$0xff]
    %v1005 = vld [vmem:[#allocation8 + $0xd8] sm:$0xff]
    %v1006 = vld [vmem:[#allocation8 + $0xe0] sm:$0xff]
    %v1007 = vld [vmem:[#allocation8 + $0xe8] sm:$0xff]
    %v1008 = vld [vmem:[#allocation8 + $0xf0] sm:$0xff]
    %v1009 = vld [vmem:[#allocation8 + $0xf8] sm:$0xff]
    %v1010 = vld [vmem:[#allocation8 + $0x100] sm:$0xff]
    %v1011 = vld [vmem:[#allocation8 + $0x108] sm:$0xff]
    %v1012 = vld [vmem:[#allocation8 + $0x110] sm:$0xff]
    %v1013 = vld [vmem:[#allocation8 + $0x118] sm:$0xff]
    %v1014 = vld [vmem:[#allocation8 + $0x120] sm:$0xff]
    %v1015 = vld [vmem:[#allocation8 + $0x128] sm:$0xff]
    %v1016 = vld [vmem:[#allocation8 + $0x130] sm:$0xff]
    %v1017 = vld [vmem:[#allocation8 + $0x138] sm:$0xff]
    %v1018 = vld [vmem:[#allocation8 + $0x140] sm:$0xff]
    %v1019 = vld [vmem:[#allocation8 + $0x148] sm:$0xff]
    %v1020 = vld [vmem:[#allocation8 + $0x150] sm:$0xff]
    %v1021 = vld [vmem:[#allocation8 + $0x158] sm:$0xff]
    %v1022 = vld [vmem:[#allocation8 + $0x160] sm:$0xff]
    %v1023 = vld [vmem:[#allocation8 + $0x168] sm:$0xff]
    %v1024 = vld [vmem:[#allocation8 + $0x170] sm:$0xff]
    %v1025 = vld [vmem:[#allocation8 + $0x178] sm:$0xff]
    %v1026 = vld [vmem:[%s5] sm:$0x7]
    %v1028 = vlaneseq
    %v1029 = vshrl.u32 %v1028, 7
    %v1030 = vsub.s32 0, %v1029
    %v1031 = vrot.slane %v1026, %v1030
    %v1032 = vlaneseq
    %v1033 = vshrl.u32 %v1032, 7
    %v1034 = vsub.s32 1, %v1033
    %v1035 = vrot.slane %v1026, %v1034
    %v1036 = vlaneseq
    %v1037 = vshrl.u32 %v1036, 7
    %v1038 = vsub.s32 2, %v1037
    %v1039 = vrot.slane %v1026, %v1038
    %1043 = vmatprep.subr.mxu0 %v979
    %1044 = vmatpush1.msra.mxu0 %v978
    %1045 = vmatprep.subr.mxu0 %v982
    %1046 = vmatpush1.msra.mxu0 %v981
    %1047 = vmatprep.subr.mxu0 %v985
    %1048 = vmatpush1.msra.mxu0 %v984
    %1049 = vmatprep.subr.mxu0 %v988
    %1050 = vmatpush1.msra.mxu0 %v987
    %1051 = vmatprep.subr.mxu0 %v991
    %1052 = vmatpush1.msra.mxu0 %v990
    %1053 = vmatprep.subr.mxu0 %v994
    %1054 = vmatpush1.msra.mxu0 %v993
    %1055 = vmatprep.subr.mxu0 %v997
    %1056 = vmatpush1.msra.mxu0 %v996
    %1057 = vmatprep.subr.mxu0 %v1000
    %1058 = vmatpush1.msra.mxu0 %v999
    %1059 = vmatprep.subr.mxu0 %v1003
    %1060 = vmatpush1.msra.mxu0 %v1002
    %1061 = vmatprep.subr.mxu0 %v1006
    %1062 = vmatpush1.msra.mxu0 %v1005
    %1063 = vmatprep.subr.mxu0 %v1009
    %1064 = vmatpush1.msra.mxu0 %v1008
    %1065 = vmatprep.subr.mxu0 %v1012
    %1066 = vmatpush1.msra.mxu0 %v1011
    %1067 = vmatprep.subr.mxu0 %v1015
    %1068 = vmatpush1.msra.mxu0 %v1014
    %1069 = vmatprep.subr.mxu0 %v1018
    %1070 = vmatpush1.msra.mxu0 %v1017
    %1071 = vmatprep.subr.mxu0 %v1021
    %1072 = vmatpush1.msra.mxu0 %v1020
    %1073 = vmatprep.subr.mxu0 %v1024
    %1074 = vmatpush1.msra.mxu0 %v1023
    %1075 = vmatprep.subr.mxu0 0.0
    %1076 = vmatpush1.msra.mxu0 0.0
    %1077 = vmatprep.subr.mxu0 0.0
    %1078 = vmatpush1.msra.mxu0 0.0
    %1079 = vmatprep.subr.mxu0 0.0
    %1080 = vmatpush1.msra.mxu0 0.0
    %1081 = vmatprep.subr.mxu0 0.0
    %1082 = vmatpush1.msra.mxu0 0.0
    %1083 = vmatprep.subr.mxu0 0.0
    %1084 = vmatpush1.msra.mxu0 0.0
    %1085 = vmatprep.subr.mxu0 0.0
    %1086 = vmatpush1.msra.mxu0 0.0
    %1087 = vmatprep.subr.mxu0 0.0
    %1088 = vmatpush1.msra.mxu0 0.0
    %1089 = vmatprep.subr.mxu0 0.0
    %1090 = vmatpush1.msra.mxu0 0.0
    %1091 = vmatprep.subr.mxu0 0.0
    %1092 = vmatpush1.msra.mxu0 0.0
    %1093 = vmatprep.subr.mxu0 0.0
    %1094 = vmatpush1.msra.mxu0 0.0
    %1095 = vmatprep.subr.mxu0 0.0
    %1096 = vmatpush1.msra.mxu0 0.0
    %1097 = vmatprep.subr.mxu0 0.0
    %1098 = vmatpush1.msra.mxu0 0.0
    %1099 = vmatprep.subr.mxu0 0.0
    %1100 = vmatpush1.msra.mxu0 0.0
    %1101 = vmatprep.subr.mxu0 0.0
    %1102 = vmatpush1.msra.mxu0 0.0
    %1103 = vmatprep.subr.mxu0 0.0
    %1104 = vmatpush1.msra.mxu0 0.0
    %1105 = vmatprep.subr.mxu0 0.0
    %1106 = vmatpush1.msra.mxu0 0.0
    %1107 = vmatprep.mubr.f32.mxu0 0.0
    %1108 = vmatmul.mubr.f32.gmra.mrb[0].mxu0 %v976
    %v1109 = vpop.f32.mrb[0].mxu0
    %v1110 = vadd.f32 %v1031, %v1109
    %v1111 = vpop.f32.mrb[0].mxu0
    %v1112 = vadd.f32 %v1035, %v1111
    %1113 = vdwg.mxu0
    %1114 = vmatprep.subr.mxu0 0.0
    %1115 = vmatpush1.msra.mxu0 %v980
    %1116 = vmatprep.subr.mxu0 0.0
    %1117 = vmatpush1.msra.mxu0 %v983
    %1118 = vmatprep.subr.mxu0 0.0
    %1119 = vmatpush1.msra.mxu0 %v986
    %1120 = vmatprep.subr.mxu0 0.0
    %1121 = vmatpush1.msra.mxu0 %v989
    %1122 = vmatprep.subr.mxu0 0.0
    %1123 = vmatpush1.msra.mxu0 %v992
    %1124 = vmatprep.subr.mxu0 0.0
    %1125 = vmatpush1.msra.mxu0 %v995
    %1126 = vmatprep.subr.mxu0 0.0
    %1127 = vmatpush1.msra.mxu0 %v998
    %1128 = vmatprep.subr.mxu0 0.0
    %1129 = vmatpush1.msra.mxu0 %v1001
    %1130 = vmatprep.subr.mxu0 0.0
    %1131 = vmatpush1.msra.mxu0 %v1004
    %1132 = vmatprep.subr.mxu0 0.0
    %1133 = vmatpush1.msra.mxu0 %v1007
    %1134 = vmatprep.subr.mxu0 0.0
    %1135 = vmatpush1.msra.mxu0 %v1010
    %1136 = vmatprep.subr.mxu0 0.0
    %1137 = vmatpush1.msra.mxu0 %v1013
    %1138 = vmatprep.subr.mxu0 0.0
    %1139 = vmatpush1.msra.mxu0 %v1016
    %1140 = vmatprep.subr.mxu0 0.0
    %1141 = vmatpush1.msra.mxu0 %v1019
    %1142 = vmatprep.subr.mxu0 0.0
    %1143 = vmatpush1.msra.mxu0 %v1022
    %1144 = vmatprep.subr.mxu0 0.0
    %1145 = vmatpush1.msra.mxu0 %v1025
    %1146 = vmatprep.subr.mxu0 0.0
    %1147 = vmatpush1.msra.mxu0 0.0
    %1148 = vmatprep.subr.mxu0 0.0
    %1149 = vmatpush1.msra.mxu0 0.0
    %1150 = vmatprep.subr.mxu0 0.0
    %1151 = vmatpush1.msra.mxu0 0.0
    %1152 = vmatprep.subr.mxu0 0.0
    %1153 = vmatpush1.msra.mxu0 0.0
    %1154 = vmatprep.subr.mxu0 0.0
    %1155 = vmatpush1.msra.mxu0 0.0
    %1156 = vmatprep.subr.mxu0 0.0
    %1157 = vmatpush1.msra.mxu0 0.0
    %1158 = vmatprep.subr.mxu0 0.0
    %1159 = vmatpush1.msra.mxu0 0.0
    %1160 = vmatprep.subr.mxu0 0.0
    %1161 = vmatpush1.msra.mxu0 0.0
    %1162 = vmatprep.subr.mxu0 0.0
    %1163 = vmatpush1.msra.mxu0 0.0
    %1164 = vmatprep.subr.mxu0 0.0
    %1165 = vmatpush1.msra.mxu0 0.0
    %1166 = vmatprep.subr.mxu0 0.0
    %1167 = vmatpush1.msra.mxu0 0.0
    %1168 = vmatprep.subr.mxu0 0.0
    %1169 = vmatpush1.msra.mxu0 0.0
    %1170 = vmatprep.subr.mxu0 0.0
    %1171 = vmatpush1.msra.mxu0 0.0
    %1172 = vmatprep.subr.mxu0 0.0
    %1173 = vmatpush1.msra.mxu0 0.0
    %1174 = vmatprep.subr.mxu0 0.0
    %1175 = vmatpush1.msra.mxu0 0.0
    %1176 = vmatprep.subr.mxu0 0.0
    %1177 = vmatpush1.msra.mxu0 0.0
    %1178 = vmatprep.mubr.f32.mxu0 0.0
    %1179 = vmatmul.mubr.f32.gmra.mrb[0].mxu0 %v976
    %v1180 = vpop.f32.mrb[0].mxu0
    %v1181 = vadd.f32 %v1039, %v1180
    %v1182 = vpop.f32.mrb[0].mxu0
    %1183 = vdwg.mxu0
    %s1184 = scalar_lea.vmem [#allocation2], 3
    %v1185 = vld [vmem:[%s1184] ss:$8 sm:$0x7]
    %v1186 = vadd.f32 %v1185, %v1110
    %v1187 = vxor.u32 %v1186, 2147483648
    %v1188 = vmul.f32 %v1187, 1.442695
    %v1189 = vpow.pop %v1188
    %v1190 = vadd.f32 %v1189, 1.0
    %v1191 = vrcp.pop %v1190
    %v1192 = vmul.f32 1.0, %v1191
    %v1194 = vrot.slane %v1185, 1
    %v1196 = vadd.f32 %v1194, %v1112
    %v1197 = vxor.u32 %v1196, 2147483648
    %v1198 = vmul.f32 %v1197, 1.442695
    %v1199 = vpow.pop %v1198
    %v1200 = vadd.f32 %v1199, 1.0
    %v1201 = vrcp.pop %v1200
    %v1202 = vmul.f32 1.0, %v1201
    %v1203 = vmul.f32 %v1192, %v1181
    %v1204 = vrot.slane %v1185, 2
    %v1206 = vadd.f32 %v1204, %v1203
    %v1207 = vtanh.pop %v1206
    %v1208 = vsub.f32 1.0, %v1202
    %v1209 = vmul.f32 %v1208, %v1207
    %v1210 = vmul.f32 %v1202, %v976
    %v1211 = vadd.f32 %v1209, %v1210
    %1212 = vst [vmem:[#allocation9 + $0x3] sm:$0x1] %v1211
    %v1213 = vld [vmem:[#allocation8] sm:$0xff]
    %v1214 = vld [vmem:[#allocation8 + $0x8] sm:$0xff]
    %v1215 = vld [vmem:[#allocation8 + $0x10] sm:$0xff]
    %v1216 = vld [vmem:[#allocation8 + $0x18] sm:$0xff]
    %v1217 = vld [vmem:[#allocation8 + $0x20] sm:$0xff]
    %v1218 = vld [vmem:[#allocation8 + $0x28] sm:$0xff]
    %v1219 = vld [vmem:[#allocation8 + $0x30] sm:$0xff]
    %v1220 = vld [vmem:[#allocation8 + $0x38] sm:$0xff]
    %v1221 = vld [vmem:[#allocation8 + $0x40] sm:$0xff]
    %v1222 = vld [vmem:[#allocation8 + $0x48] sm:$0xff]
    %v1223 = vld [vmem:[#allocation8 + $0x50] sm:$0xff]
    %v1224 = vld [vmem:[#allocation8 + $0x58] sm:$0xff]
    %v1225 = vld [vmem:[#allocation8 + $0x60] sm:$0xff]
    %v1226 = vld [vmem:[#allocation8 + $0x68] sm:$0xff]
    %v1227 = vld [vmem:[#allocation8 + $0x70] sm:$0xff]
    %v1228 = vld [vmem:[#allocation8 + $0x78] sm:$0xff]
    %v1229 = vld [vmem:[#allocation8 + $0x80] sm:$0xff]
    %v1230 = vld [vmem:[#allocation8 + $0x88] sm:$0xff]
    %v1231 = vld [vmem:[#allocation8 + $0x90] sm:$0xff]
    %v1232 = vld [vmem:[#allocation8 + $0x98] sm:$0xff]
    %v1233 = vld [vmem:[#allocation8 + $0xa0] sm:$0xff]
    %v1234 = vld [vmem:[#allocation8 + $0xa8] sm:$0xff]
    %v1235 = vld [vmem:[#allocation8 + $0xb0] sm:$0xff]
    %v1236 = vld [vmem:[#allocation8 + $0xb8] sm:$0xff]
    %v1237 = vld [vmem:[#allocation8 + $0xc0] sm:$0xff]
    %v1238 = vld [vmem:[#allocation8 + $0xc8] sm:$0xff]
    %v1239 = vld [vmem:[#allocation8 + $0xd0] sm:$0xff]
    %v1240 = vld [vmem:[#allocation8 + $0xd8] sm:$0xff]
    %v1241 = vld [vmem:[#allocation8 + $0xe0] sm:$0xff]
    %v1242 = vld [vmem:[#allocation8 + $0xe8] sm:$0xff]
    %v1243 = vld [vmem:[#allocation8 + $0xf0] sm:$0xff]
    %v1244 = vld [vmem:[#allocation8 + $0xf8] sm:$0xff]
    %v1245 = vld [vmem:[#allocation8 + $0x100] sm:$0xff]
    %v1246 = vld [vmem:[#allocation8 + $0x108] sm:$0xff]
    %v1247 = vld [vmem:[#allocation8 + $0x110] sm:$0xff]
    %v1248 = vld [vmem:[#allocation8 + $0x118] sm:$0xff]
    %v1249 = vld [vmem:[#allocation8 + $0x120] sm:$0xff]
    %v1250 = vld [vmem:[#allocation8 + $0x128] sm:$0xff]
    %v1251 = vld [vmem:[#allocation8 + $0x130] sm:$0xff]
    %v1252 = vld [vmem:[#allocation8 + $0x138] sm:$0xff]
    %v1253 = vld [vmem:[#allocation8 + $0x140] sm:$0xff]
    %v1254 = vld [vmem:[#allocation8 + $0x148] sm:$0xff]
    %v1255 = vld [vmem:[#allocation8 + $0x150] sm:$0xff]
    %v1256 = vld [vmem:[#allocation8 + $0x158] sm:$0xff]
    %v1257 = vld [vmem:[#allocation8 + $0x160] sm:$0xff]
    %v1258 = vld [vmem:[#allocation8 + $0x168] sm:$0xff]
    %v1259 = vld [vmem:[#allocation8 + $0x170] sm:$0xff]
    %v1260 = vld [vmem:[#allocation8 + $0x178] sm:$0xff]
    %v1261 = vld [vmem:[%s5] sm:$0x7]
    %v1263 = vlaneseq
    %v1264 = vshrl.u32 %v1263, 7
    %v1265 = vsub.s32 0, %v1264
    %v1266 = vrot.slane %v1261, %v1265
    %v1267 = vlaneseq
    %v1268 = vshrl.u32 %v1267, 7
    %v1269 = vsub.s32 1, %v1268
    %v1270 = vrot.slane %v1261, %v1269
    %v1271 = vlaneseq
    %v1272 = vshrl.u32 %v1271, 7
    %v1273 = vsub.s32 2, %v1272
    %v1274 = vrot.slane %v1261, %v1273
    %1278 = vmatprep.subr.mxu0 %v1214
    %1279 = vmatpush1.msra.mxu0 %v1213
    %1280 = vmatprep.subr.mxu0 %v1217
    %1281 = vmatpush1.msra.mxu0 %v1216
    %1282 = vmatprep.subr.mxu0 %v1220
    %1283 = vmatpush1.msra.mxu0 %v1219
    %1284 = vmatprep.subr.mxu0 %v1223
    %1285 = vmatpush1.msra.mxu0 %v1222
    %1286 = vmatprep.subr.mxu0 %v1226
    %1287 = vmatpush1.msra.mxu0 %v1225
    %1288 = vmatprep.subr.mxu0 %v1229
    %1289 = vmatpush1.msra.mxu0 %v1228
    %1290 = vmatprep.subr.mxu0 %v1232
    %1291 = vmatpush1.msra.mxu0 %v1231
    %1292 = vmatprep.subr.mxu0 %v1235
    %1293 = vmatpush1.msra.mxu0 %v1234
    %1294 = vmatprep.subr.mxu0 %v1238
    %1295 = vmatpush1.msra.mxu0 %v1237
    %1296 = vmatprep.subr.mxu0 %v1241
    %1297 = vmatpush1.msra.mxu0 %v1240
    %1298 = vmatprep.subr.mxu0 %v1244
    %1299 = vmatpush1.msra.mxu0 %v1243
    %1300 = vmatprep.subr.mxu0 %v1247
    %1301 = vmatpush1.msra.mxu0 %v1246
    %1302 = vmatprep.subr.mxu0 %v1250
    %1303 = vmatpush1.msra.mxu0 %v1249
    %1304 = vmatprep.subr.mxu0 %v1253
    %1305 = vmatpush1.msra.mxu0 %v1252
    %1306 = vmatprep.subr.mxu0 %v1256
    %1307 = vmatpush1.msra.mxu0 %v1255
    %1308 = vmatprep.subr.mxu0 %v1259
    %1309 = vmatpush1.msra.mxu0 %v1258
    %1310 = vmatprep.subr.mxu0 0.0
    %1311 = vmatpush1.msra.mxu0 0.0
    %1312 = vmatprep.subr.mxu0 0.0
    %1313 = vmatpush1.msra.mxu0 0.0
    %1314 = vmatprep.subr.mxu0 0.0
    %1315 = vmatpush1.msra.mxu0 0.0
    %1316 = vmatprep.subr.mxu0 0.0
    %1317 = vmatpush1.msra.mxu0 0.0
    %1318 = vmatprep.subr.mxu0 0.0
    %1319 = vmatpush1.msra.mxu0 0.0
    %1320 = vmatprep.subr.mxu0 0.0
    %1321 = vmatpush1.msra.mxu0 0.0
    %1322 = vmatprep.subr.mxu0 0.0
    %1323 = vmatpush1.msra.mxu0 0.0
    %1324 = vmatprep.subr.mxu0 0.0
    %1325 = vmatpush1.msra.mxu0 0.0
    %1326 = vmatprep.subr.mxu0 0.0
    %1327 = vmatpush1.msra.mxu0 0.0
    %1328 = vmatprep.subr.mxu0 0.0
    %1329 = vmatpush1.msra.mxu0 0.0
    %1330 = vmatprep.subr.mxu0 0.0
    %1331 = vmatpush1.msra.mxu0 0.0
    %1332 = vmatprep.subr.mxu0 0.0
    %1333 = vmatpush1.msra.mxu0 0.0
    %1334 = vmatprep.subr.mxu0 0.0
    %1335 = vmatpush1.msra.mxu0 0.0
    %1336 = vmatprep.subr.mxu0 0.0
    %1337 = vmatpush1.msra.mxu0 0.0
    %1338 = vmatprep.subr.mxu0 0.0
    %1339 = vmatpush1.msra.mxu0 0.0
    %1340 = vmatprep.subr.mxu0 0.0
    %1341 = vmatpush1.msra.mxu0 0.0
    %1342 = vmatprep.mubr.f32.mxu0 0.0
    %1343 = vmatmul.mubr.f32.gmra.mrb[0].mxu0 %v1211
    %v1344 = vpop.f32.mrb[0].mxu0
    %v1345 = vadd.f32 %v1266, %v1344
    %v1346 = vpop.f32.mrb[0].mxu0
    %v1347 = vadd.f32 %v1270, %v1346
    %1348 = vdwg.mxu0
    %1349 = vmatprep.subr.mxu0 0.0
    %1350 = vmatpush1.msra.mxu0 %v1215
    %1351 = vmatprep.subr.mxu0 0.0
    %1352 = vmatpush1.msra.mxu0 %v1218
    %1353 = vmatprep.subr.mxu0 0.0
    %1354 = vmatpush1.msra.mxu0 %v1221
    %1355 = vmatprep.subr.mxu0 0.0
    %1356 = vmatpush1.msra.mxu0 %v1224
    %1357 = vmatprep.subr.mxu0 0.0
    %1358 = vmatpush1.msra.mxu0 %v1227
    %1359 = vmatprep.subr.mxu0 0.0
    %1360 = vmatpush1.msra.mxu0 %v1230
    %1361 = vmatprep.subr.mxu0 0.0
    %1362 = vmatpush1.msra.mxu0 %v1233
    %1363 = vmatprep.subr.mxu0 0.0
    %1364 = vmatpush1.msra.mxu0 %v1236
    %1365 = vmatprep.subr.mxu0 0.0
    %1366 = vmatpush1.msra.mxu0 %v1239
    %1367 = vmatprep.subr.mxu0 0.0
    %1368 = vmatpush1.msra.mxu0 %v1242
    %1369 = vmatprep.subr.mxu0 0.0
    %1370 = vmatpush1.msra.mxu0 %v1245
    %1371 = vmatprep.subr.mxu0 0.0
    %1372 = vmatpush1.msra.mxu0 %v1248
    %1373 = vmatprep.subr.mxu0 0.0
    %1374 = vmatpush1.msra.mxu0 %v1251
    %1375 = vmatprep.subr.mxu0 0.0
    %1376 = vmatpush1.msra.mxu0 %v1254
    %1377 = vmatprep.subr.mxu0 0.0
    %1378 = vmatpush1.msra.mxu0 %v1257
    %1379 = vmatprep.subr.mxu0 0.0
    %1380 = vmatpush1.msra.mxu0 %v1260
    %1381 = vmatprep.subr.mxu0 0.0
    %1382 = vmatpush1.msra.mxu0 0.0
    %1383 = vmatprep.subr.mxu0 0.0
    %1384 = vmatpush1.msra.mxu0 0.0
    %1385 = vmatprep.subr.mxu0 0.0
    %1386 = vmatpush1.msra.mxu0 0.0
    %1387 = vmatprep.subr.mxu0 0.0
    %1388 = vmatpush1.msra.mxu0 0.0
    %1389 = vmatprep.subr.mxu0 0.0
    %1390 = vmatpush1.msra.mxu0 0.0
    %1391 = vmatprep.subr.mxu0 0.0
    %1392 = vmatpush1.msra.mxu0 0.0
    %1393 = vmatprep.subr.mxu0 0.0
    %1394 = vmatpush1.msra.mxu0 0.0
    %1395 = vmatprep.subr.mxu0 0.0
    %1396 = vmatpush1.msra.mxu0 0.0
    %1397 = vmatprep.subr.mxu0 0.0
    %1398 = vmatpush1.msra.mxu0 0.0
    %1399 = vmatprep.subr.mxu0 0.0
    %1400 = vmatpush1.msra.mxu0 0.0
    %1401 = vmatprep.subr.mxu0 0.0
    %1402 = vmatpush1.msra.mxu0 0.0
    %1403 = vmatprep.subr.mxu0 0.0
    %1404 = vmatpush1.msra.mxu0 0.0
    %1405 = vmatprep.subr.mxu0 0.0
    %1406 = vmatpush1.msra.mxu0 0.0
    %1407 = vmatprep.subr.mxu0 0.0
    %1408 = vmatpush1.msra.mxu0 0.0
    %1409 = vmatprep.subr.mxu0 0.0
    %1410 = vmatpush1.msra.mxu0 0.0
    %1411 = vmatprep.subr.mxu0 0.0
    %1412 = vmatpush1.msra.mxu0 0.0
    %1413 = vmatprep.mubr.f32.mxu0 0.0
    %1414 = vmatmul.mubr.f32.gmra.mrb[0].mxu0 %v1211
    %v1415 = vpop.f32.mrb[0].mxu0
    %v1416 = vadd.f32 %v1274, %v1415
    %v1417 = vpop.f32.mrb[0].mxu0
    %1418 = vdwg.mxu0
    %s1419 = scalar_lea.vmem [#allocation2], 4
    %v1420 = vld [vmem:[%s1419] ss:$8 sm:$0x7]
    %v1421 = vadd.f32 %v1420, %v1345
    %v1422 = vxor.u32 %v1421, 2147483648
    %v1423 = vmul.f32 %v1422, 1.442695
    %v1424 = vpow.pop %v1423
    %v1425 = vadd.f32 %v1424, 1.0
    %v1426 = vrcp.pop %v1425
    %v1427 = vmul.f32 1.0, %v1426
    %v1429 = vrot.slane %v1420, 1
    %v1431 = vadd.f32 %v1429, %v1347
    %v1432 = vxor.u32 %v1431, 2147483648
    %v1433 = vmul.f32 %v1432, 1.442695
    %v1434 = vpow.pop %v1433
    %v1435 = vadd.f32 %v1434, 1.0
    %v1436 = vrcp.pop %v1435
    %v1437 = vmul.f32 1.0, %v1436
    %v1438 = vmul.f32 %v1427, %v1416
    %v1439 = vrot.slane %v1420, 2
    %v1441 = vadd.f32 %v1439, %v1438
    %v1442 = vtanh.pop %v1441
    %v1443 = vsub.f32 1.0, %v1437
    %v1444 = vmul.f32 %v1443, %v1442
    %v1445 = vmul.f32 %v1437, %v1211
    %v1446 = vadd.f32 %v1444, %v1445
    %1447 = vst [vmem:[#allocation9 + $0x4] sm:$0x1] %v1446
    %v1448 = vld [vmem:[#allocation8] sm:$0xff]
    %v1449 = vld [vmem:[#allocation8 + $0x8] sm:$0xff]
    %v1450 = vld [vmem:[#allocation8 + $0x10] sm:$0xff]
    %v1451 = vld [vmem:[#allocation8 + $0x18] sm:$0xff]
    %v1452 = vld [vmem:[#allocation8 + $0x20] sm:$0xff]
    %v1453 = vld [vmem:[#allocation8 + $0x28] sm:$0xff]
    %v1454 = vld [vmem:[#allocation8 + $0x30] sm:$0xff]
    %v1455 = vld [vmem:[#allocation8 + $0x38] sm:$0xff]
    %v1456 = vld [vmem:[#allocation8 + $0x40] sm:$0xff]
    %v1457 = vld [vmem:[#allocation8 + $0x48] sm:$0xff]
    %v1458 = vld [vmem:[#allocation8 + $0x50] sm:$0xff]
    %v1459 = vld [vmem:[#allocation8 + $0x58] sm:$0xff]
    %v1460 = vld [vmem:[#allocation8 + $0x60] sm:$0xff]
    %v1461 = vld [vmem:[#allocation8 + $0x68] sm:$0xff]
    %v1462 = vld [vmem:[#allocation8 + $0x70] sm:$0xff]
    %v1463 = vld [vmem:[#allocation8 + $0x78] sm:$0xff]
    %v1464 = vld [vmem:[#allocation8 + $0x80] sm:$0xff]
    %v1465 = vld [vmem:[#allocation8 + $0x88] sm:$0xff]
    %v1466 = vld [vmem:[#allocation8 + $0x90] sm:$0xff]
    %v1467 = vld [vmem:[#allocation8 + $0x98] sm:$0xff]
    %v1468 = vld [vmem:[#allocation8 + $0xa0] sm:$0xff]
    %v1469 = vld [vmem:[#allocation8 + $0xa8] sm:$0xff]
    %v1470 = vld [vmem:[#allocation8 + $0xb0] sm:$0xff]
    %v1471 = vld [vmem:[#allocation8 + $0xb8] sm:$0xff]
    %v1472 = vld [vmem:[#allocation8 + $0xc0] sm:$0xff]
    %v1473 = vld [vmem:[#allocation8 + $0xc8] sm:$0xff]
    %v1474 = vld [vmem:[#allocation8 + $0xd0] sm:$0xff]
    %v1475 = vld [vmem:[#allocation8 + $0xd8] sm:$0xff]
    %v1476 = vld [vmem:[#allocation8 + $0xe0] sm:$0xff]
    %v1477 = vld [vmem:[#allocation8 + $0xe8] sm:$0xff]
    %v1478 = vld [vmem:[#allocation8 + $0xf0] sm:$0xff]
    %v1479 = vld [vmem:[#allocation8 + $0xf8] sm:$0xff]
    %v1480 = vld [vmem:[#allocation8 + $0x100] sm:$0xff]
    %v1481 = vld [vmem:[#allocation8 + $0x108] sm:$0xff]
    %v1482 = vld [vmem:[#allocation8 + $0x110] sm:$0xff]
    %v1483 = vld [vmem:[#allocation8 + $0x118] sm:$0xff]
    %v1484 = vld [vmem:[#allocation8 + $0x120] sm:$0xff]
    %v1485 = vld [vmem:[#allocation8 + $0x128] sm:$0xff]
    %v1486 = vld [vmem:[#allocation8 + $0x130] sm:$0xff]
    %v1487 = vld [vmem:[#allocation8 + $0x138] sm:$0xff]
    %v1488 = vld [vmem:[#allocation8 + $0x140] sm:$0xff]
    %v1489 = vld [vmem:[#allocation8 + $0x148] sm:$0xff]
    %v1490 = vld [vmem:[#allocation8 + $0x150] sm:$0xff]
    %v1491 = vld [vmem:[#allocation8 + $0x158] sm:$0xff]
    %v1492 = vld [vmem:[#allocation8 + $0x160] sm:$0xff]
    %v1493 = vld [vmem:[#allocation8 + $0x168] sm:$0xff]
    %v1494 = vld [vmem:[#allocation8 + $0x170] sm:$0xff]
    %v1495 = vld [vmem:[#allocation8 + $0x178] sm:$0xff]
    %v1496 = vld [vmem:[%s5] sm:$0x7]
    %v1498 = vlaneseq
    %v1499 = vshrl.u32 %v1498, 7
    %v1500 = vsub.s32 0, %v1499
    %v1501 = vrot.slane %v1496, %v1500
    %v1502 = vlaneseq
    %v1503 = vshrl.u32 %v1502, 7
    %v1504 = vsub.s32 1, %v1503
    %v1505 = vrot.slane %v1496, %v1504
    %v1506 = vlaneseq
    %v1507 = vshrl.u32 %v1506, 7
    %v1508 = vsub.s32 2, %v1507
    %v1509 = vrot.slane %v1496, %v1508
    %1513 = vmatprep.subr.mxu0 %v1449
    %1514 = vmatpush1.msra.mxu0 %v1448
    %1515 = vmatprep.subr.mxu0 %v1452
    %1516 = vmatpush1.msra.mxu0 %v1451
    %1517 = vmatprep.subr.mxu0 %v1455
    %1518 = vmatpush1.msra.mxu0 %v1454
    %1519 = vmatprep.subr.mxu0 %v1458
    %1520 = vmatpush1.msra.mxu0 %v1457
    %1521 = vmatprep.subr.mxu0 %v1461
    %1522 = vmatpush1.msra.mxu0 %v1460
    %1523 = vmatprep.subr.mxu0 %v1464
    %1524 = vmatpush1.msra.mxu0 %v1463
    %1525 = vmatprep.subr.mxu0 %v1467
    %1526 = vmatpush1.msra.mxu0 %v1466
    %1527 = vmatprep.subr.mxu0 %v1470
    %1528 = vmatpush1.msra.mxu0 %v1469
    %1529 = vmatprep.subr.mxu0 %v1473
    %1530 = vmatpush1.msra.mxu0 %v1472
    %1531 = vmatprep.subr.mxu0 %v1476
    %1532 = vmatpush1.msra.mxu0 %v1475
    %1533 = vmatprep.subr.mxu0 %v1479
    %1534 = vmatpush1.msra.mxu0 %v1478
    %1535 = vmatprep.subr.mxu0 %v1482
    %1536 = vmatpush1.msra.mxu0 %v1481
    %1537 = vmatprep.subr.mxu0 %v1485
    %1538 = vmatpush1.msra.mxu0 %v1484
    %1539 = vmatprep.subr.mxu0 %v1488
    %1540 = vmatpush1.msra.mxu0 %v1487
    %1541 = vmatprep.subr.mxu0 %v1491
    %1542 = vmatpush1.msra.mxu0 %v1490
    %1543 = vmatprep.subr.mxu0 %v1494
    %1544 = vmatpush1.msra.mxu0 %v1493
    %1545 = vmatprep.subr.mxu0 0.0
    %1546 = vmatpush1.msra.mxu0 0.0
    %1547 = vmatprep.subr.mxu0 0.0
    %1548 = vmatpush1.msra.mxu0 0.0
    %1549 = vmatprep.subr.mxu0 0.0
    %1550 = vmatpush1.msra.mxu0 0.0
    %1551 = vmatprep.subr.mxu0 0.0
    %1552 = vmatpush1.msra.mxu0 0.0
    %1553 = vmatprep.subr.mxu0 0.0
    %1554 = vmatpush1.msra.mxu0 0.0
    %1555 = vmatprep.subr.mxu0 0.0
    %1556 = vmatpush1.msra.mxu0 0.0
    %1557 = vmatprep.subr.mxu0 0.0
    %1558 = vmatpush1.msra.mxu0 0.0
    %1559 = vmatprep.subr.mxu0 0.0
    %1560 = vmatpush1.msra.mxu0 0.0
    %1561 = vmatprep.subr.mxu0 0.0
    %1562 = vmatpush1.msra.mxu0 0.0
    %1563 = vmatprep.subr.mxu0 0.0
    %1564 = vmatpush1.msra.mxu0 0.0
    %1565 = vmatprep.subr.mxu0 0.0
    %1566 = vmatpush1.msra.mxu0 0.0
    %1567 = vmatprep.subr.mxu0 0.0
    %1568 = vmatpush1.msra.mxu0 0.0
    %1569 = vmatprep.subr.mxu0 0.0
    %1570 = vmatpush1.msra.mxu0 0.0
    %1571 = vmatprep.subr.mxu0 0.0
    %1572 = vmatpush1.msra.mxu0 0.0
    %1573 = vmatprep.subr.mxu0 0.0
    %1574 = vmatpush1.msra.mxu0 0.0
    %1575 = vmatprep.subr.mxu0 0.0
    %1576 = vmatpush1.msra.mxu0 0.0
    %1577 = vmatprep.mubr.f32.mxu0 0.0
    %1578 = vmatmul.mubr.f32.gmra.mrb[0].mxu0 %v1446
    %v1579 = vpop.f32.mrb[0].mxu0
    %v1580 = vadd.f32 %v1501, %v1579
    %v1581 = vpop.f32.mrb[0].mxu0
    %v1582 = vadd.f32 %v1505, %v1581
    %1583 = vdwg.mxu0
    %1584 = vmatprep.subr.mxu0 0.0
    %1585 = vmatpush1.msra.mxu0 %v1450
    %1586 = vmatprep.subr.mxu0 0.0
    %1587 = vmatpush1.msra.mxu0 %v1453
    %1588 = vmatprep.subr.mxu0 0.0
    %1589 = vmatpush1.msra.mxu0 %v1456
    %1590 = vmatprep.subr.mxu0 0.0
    %1591 = vmatpush1.msra.mxu0 %v1459
    %1592 = vmatprep.subr.mxu0 0.0
    %1593 = vmatpush1.msra.mxu0 %v1462
    %1594 = vmatprep.subr.mxu0 0.0
    %1595 = vmatpush1.msra.mxu0 %v1465
    %1596 = vmatprep.subr.mxu0 0.0
    %1597 = vmatpush1.msra.mxu0 %v1468
    %1598 = vmatprep.subr.mxu0 0.0
    %1599 = vmatpush1.msra.mxu0 %v1471
    %1600 = vmatprep.subr.mxu0 0.0
    %1601 = vmatpush1.msra.mxu0 %v1474
    %1602 = vmatprep.subr.mxu0 0.0
    %1603 = vmatpush1.msra.mxu0 %v1477
    %1604 = vmatprep.subr.mxu0 0.0
    %1605 = vmatpush1.msra.mxu0 %v1480
    %1606 = vmatprep.subr.mxu0 0.0
    %1607 = vmatpush1.msra.mxu0 %v1483
    %1608 = vmatprep.subr.mxu0 0.0
    %1609 = vmatpush1.msra.mxu0 %v1486
    %1610 = vmatprep.subr.mxu0 0.0
    %1611 = vmatpush1.msra.mxu0 %v1489
    %1612 = vmatprep.subr.mxu0 0.0
    %1613 = vmatpush1.msra.mxu0 %v1492
    %1614 = vmatprep.subr.mxu0 0.0
    %1615 = vmatpush1.msra.mxu0 %v1495
    %1616 = vmatprep.subr.mxu0 0.0
    %1617 = vmatpush1.msra.mxu0 0.0
    %1618 = vmatprep.subr.mxu0 0.0
    %1619 = vmatpush1.msra.mxu0 0.0
    %1620 = vmatprep.subr.mxu0 0.0
    %1621 = vmatpush1.msra.mxu0 0.0
    %1622 = vmatprep.subr.mxu0 0.0
    %1623 = vmatpush1.msra.mxu0 0.0
    %1624 = vmatprep.subr.mxu0 0.0
    %1625 = vmatpush1.msra.mxu0 0.0
    %1626 = vmatprep.subr.mxu0 0.0
    %1627 = vmatpush1.msra.mxu0 0.0
    %1628 = vmatprep.subr.mxu0 0.0
    %1629 = vmatpush1.msra.mxu0 0.0
    %1630 = vmatprep.subr.mxu0 0.0
    %1631 = vmatpush1.msra.mxu0 0.0
    %1632 = vmatprep.subr.mxu0 0.0
    %1633 = vmatpush1.msra.mxu0 0.0
    %1634 = vmatprep.subr.mxu0 0.0
    %1635 = vmatpush1.msra.mxu0 0.0
    %1636 = vmatprep.subr.mxu0 0.0
    %1637 = vmatpush1.msra.mxu0 0.0
    %1638 = vmatprep.subr.mxu0 0.0
    %1639 = vmatpush1.msra.mxu0 0.0
    %1640 = vmatprep.subr.mxu0 0.0
    %1641 = vmatpush1.msra.mxu0 0.0
    %1642 = vmatprep.subr.mxu0 0.0
    %1643 = vmatpush1.msra.mxu0 0.0
    %1644 = vmatprep.subr.mxu0 0.0
    %1645 = vmatpush1.msra.mxu0 0.0
    %1646 = vmatprep.subr.mxu0 0.0
    %1647 = vmatpush1.msra.mxu0 0.0
    %1648 = vmatprep.mubr.f32.mxu0 0.0
    %1649 = vmatmul.mubr.f32.gmra.mrb[0].mxu0 %v1446
    %v1650 = vpop.f32.mrb[0].mxu0
    %v1651 = vadd.f32 %v1509, %v1650
    %v1652 = vpop.f32.mrb[0].mxu0
    %1653 = vdwg.mxu0
    %s1654 = scalar_lea.vmem [#allocation2], 5
    %v1655 = vld [vmem:[%s1654] ss:$8 sm:$0x7]
    %v1656 = vadd.f32 %v1655, %v1580
    %v1657 = vxor.u32 %v1656, 2147483648
    %v1658 = vmul.f32 %v1657, 1.442695
    %v1659 = vpow.pop %v1658
    %v1660 = vadd.f32 %v1659, 1.0
    %v1661 = vrcp.pop %v1660
    %v1662 = vmul.f32 1.0, %v1661
    %v1664 = vrot.slane %v1655, 1
    %v1666 = vadd.f32 %v1664, %v1582
    %v1667 = vxor.u32 %v1666, 2147483648
    %v1668 = vmul.f32 %v1667, 1.442695
    %v1669 = vpow.pop %v1668
    %v1670 = vadd.f32 %v1669, 1.0
    %v1671 = vrcp.pop %v1670
    %v1672 = vmul.f32 1.0, %v1671
    %v1673 = vmul.f32 %v1662, %v1651
    %v1674 = vrot.slane %v1655, 2
    %v1676 = vadd.f32 %v1674, %v1673
    %v1677 = vtanh.pop %v1676
    %v1678 = vsub.f32 1.0, %v1672
    %v1679 = vmul.f32 %v1678, %v1677
    %v1680 = vmul.f32 %v1672, %v1446
    %v1681 = vadd.f32 %v1679, %v1680
    %1682 = vst [vmem:[#allocation9 + $0x5] sm:$0x1] %v1681
    %v1683 = vld [vmem:[#allocation8] sm:$0xff]
    %v1684 = vld [vmem:[#allocation8 + $0x8] sm:$0xff]
    %v1685 = vld [vmem:[#allocation8 + $0x10] sm:$0xff]
    %v1686 = vld [vmem:[#allocation8 + $0x18] sm:$0xff]
    %v1687 = vld [vmem:[#allocation8 + $0x20] sm:$0xff]
    %v1688 = vld [vmem:[#allocation8 + $0x28] sm:$0xff]
    %v1689 = vld [vmem:[#allocation8 + $0x30] sm:$0xff]
    %v1690 = vld [vmem:[#allocation8 + $0x38] sm:$0xff]
    %v1691 = vld [vmem:[#allocation8 + $0x40] sm:$0xff]
    %v1692 = vld [vmem:[#allocation8 + $0x48] sm:$0xff]
    %v1693 = vld [vmem:[#allocation8 + $0x50] sm:$0xff]
    %v1694 = vld [vmem:[#allocation8 + $0x58] sm:$0xff]
    %v1695 = vld [vmem:[#allocation8 + $0x60] sm:$0xff]
    %v1696 = vld [vmem:[#allocation8 + $0x68] sm:$0xff]
    %v1697 = vld [vmem:[#allocation8 + $0x70] sm:$0xff]
    %v1698 = vld [vmem:[#allocation8 + $0x78] sm:$0xff]
    %v1699 = vld [vmem:[#allocation8 + $0x80] sm:$0xff]
    %v1700 = vld [vmem:[#allocation8 + $0x88] sm:$0xff]
    %v1701 = vld [vmem:[#allocation8 + $0x90] sm:$0xff]
    %v1702 = vld [vmem:[#allocation8 + $0x98] sm:$0xff]
    %v1703 = vld [vmem:[#allocation8 + $0xa0] sm:$0xff]
    %v1704 = vld [vmem:[#allocation8 + $0xa8] sm:$0xff]
    %v1705 = vld [vmem:[#allocation8 + $0xb0] sm:$0xff]
    %v1706 = vld [vmem:[#allocation8 + $0xb8] sm:$0xff]
    %v1707 = vld [vmem:[#allocation8 + $0xc0] sm:$0xff]
    %v1708 = vld [vmem:[#allocation8 + $0xc8] sm:$0xff]
    %v1709 = vld [vmem:[#allocation8 + $0xd0] sm:$0xff]
    %v1710 = vld [vmem:[#allocation8 + $0xd8] sm:$0xff]
    %v1711 = vld [vmem:[#allocation8 + $0xe0] sm:$0xff]
    %v1712 = vld [vmem:[#allocation8 + $0xe8] sm:$0xff]
    %v1713 = vld [vmem:[#allocation8 + $0xf0] sm:$0xff]
    %v1714 = vld [vmem:[#allocation8 + $0xf8] sm:$0xff]
    %v1715 = vld [vmem:[#allocation8 + $0x100] sm:$0xff]
    %v1716 = vld [vmem:[#allocation8 + $0x108] sm:$0xff]
    %v1717 = vld [vmem:[#allocation8 + $0x110] sm:$0xff]
    %v1718 = vld [vmem:[#allocation8 + $0x118] sm:$0xff]
    %v1719 = vld [vmem:[#allocation8 + $0x120] sm:$0xff]
    %v1720 = vld [vmem:[#allocation8 + $0x128] sm:$0xff]
    %v1721 = vld [vmem:[#allocation8 + $0x130] sm:$0xff]
    %v1722 = vld [vmem:[#allocation8 + $0x138] sm:$0xff]
    %v1723 = vld [vmem:[#allocation8 + $0x140] sm:$0xff]
    %v1724 = vld [vmem:[#allocation8 + $0x148] sm:$0xff]
    %v1725 = vld [vmem:[#allocation8 + $0x150] sm:$0xff]
    %v1726 = vld [vmem:[#allocation8 + $0x158] sm:$0xff]
    %v1727 = vld [vmem:[#allocation8 + $0x160] sm:$0xff]
    %v1728 = vld [vmem:[#allocation8 + $0x168] sm:$0xff]
    %v1729 = vld [vmem:[#allocation8 + $0x170] sm:$0xff]
    %v1730 = vld [vmem:[#allocation8 + $0x178] sm:$0xff]
    %v1731 = vld [vmem:[%s5] sm:$0x7]
    %v1733 = vlaneseq
    %v1734 = vshrl.u32 %v1733, 7
    %v1735 = vsub.s32 0, %v1734
    %v1736 = vrot.slane %v1731, %v1735
    %v1737 = vlaneseq
    %v1738 = vshrl.u32 %v1737, 7
    %v1739 = vsub.s32 1, %v1738
    %v1740 = vrot.slane %v1731, %v1739
    %v1741 = vlaneseq
    %v1742 = vshrl.u32 %v1741, 7
    %v1743 = vsub.s32 2, %v1742
    %v1744 = vrot.slane %v1731, %v1743
    %1748 = vmatprep.subr.mxu0 %v1684
    %1749 = vmatpush1.msra.mxu0 %v1683
    %1750 = vmatprep.subr.mxu0 %v1687
    %1751 = vmatpush1.msra.mxu0 %v1686
    %1752 = vmatprep.subr.mxu0 %v1690
    %1753 = vmatpush1.msra.mxu0 %v1689
    %1754 = vmatprep.subr.mxu0 %v1693
    %1755 = vmatpush1.msra.mxu0 %v1692
    %1756 = vmatprep.subr.mxu0 %v1696
    %1757 = vmatpush1.msra.mxu0 %v1695
    %1758 = vmatprep.subr.mxu0 %v1699
    %1759 = vmatpush1.msra.mxu0 %v1698
    %1760 = vmatprep.subr.mxu0 %v1702
    %1761 = vmatpush1.msra.mxu0 %v1701
    %1762 = vmatprep.subr.mxu0 %v1705
    %1763 = vmatpush1.msra.mxu0 %v1704
    %1764 = vmatprep.subr.mxu0 %v1708
    %1765 = vmatpush1.msra.mxu0 %v1707
    %1766 = vmatprep.subr.mxu0 %v1711
    %1767 = vmatpush1.msra.mxu0 %v1710
    %1768 = vmatprep.subr.mxu0 %v1714
    %1769 = vmatpush1.msra.mxu0 %v1713
    %1770 = vmatprep.subr.mxu0 %v1717
    %1771 = vmatpush1.msra.mxu0 %v1716
    %1772 = vmatprep.subr.mxu0 %v1720
    %1773 = vmatpush1.msra.mxu0 %v1719
    %1774 = vmatprep.subr.mxu0 %v1723
    %1775 = vmatpush1.msra.mxu0 %v1722
    %1776 = vmatprep.subr.mxu0 %v1726
    %1777 = vmatpush1.msra.mxu0 %v1725
    %1778 = vmatprep.subr.mxu0 %v1729
    %1779 = vmatpush1.msra.mxu0 %v1728
    %1780 = vmatprep.subr.mxu0 0.0
    %1781 = vmatpush1.msra.mxu0 0.0
    %1782 = vmatprep.subr.mxu0 0.0
    %1783 = vmatpush1.msra.mxu0 0.0
    %1784 = vmatprep.subr.mxu0 0.0
    %1785 = vmatpush1.msra.mxu0 0.0
    %1786 = vmatprep.subr.mxu0 0.0
    %1787 = vmatpush1.msra.mxu0 0.0
    %1788 = vmatprep.subr.mxu0 0.0
    %1789 = vmatpush1.msra.mxu0 0.0
    %1790 = vmatprep.subr.mxu0 0.0
    %1791 = vmatpush1.msra.mxu0 0.0
    %1792 = vmatprep.subr.mxu0 0.0
    %1793 = vmatpush1.msra.mxu0 0.0
    %1794 = vmatprep.subr.mxu0 0.0
    %1795 = vmatpush1.msra.mxu0 0.0
    %1796 = vmatprep.subr.mxu0 0.0
    %1797 = vmatpush1.msra.mxu0 0.0
    %1798 = vmatprep.subr.mxu0 0.0
    %1799 = vmatpush1.msra.mxu0 0.0
    %1800 = vmatprep.subr.mxu0 0.0
    %1801 = vmatpush1.msra.mxu0 0.0
    %1802 = vmatprep.subr.mxu0 0.0
    %1803 = vmatpush1.msra.mxu0 0.0
    %1804 = vmatprep.subr.mxu0 0.0
    %1805 = vmatpush1.msra.mxu0 0.0
    %1806 = vmatprep.subr.mxu0 0.0
    %1807 = vmatpush1.msra.mxu0 0.0
    %1808 = vmatprep.subr.mxu0 0.0
    %1809 = vmatpush1.msra.mxu0 0.0
    %1810 = vmatprep.subr.mxu0 0.0
    %1811 = vmatpush1.msra.mxu0 0.0
    %1812 = vmatprep.mubr.f32.mxu0 0.0
    %1813 = vmatmul.mubr.f32.gmra.mrb[0].mxu0 %v1681
    %v1814 = vpop.f32.mrb[0].mxu0
    %v1815 = vadd.f32 %v1736, %v1814
    %v1816 = vpop.f32.mrb[0].mxu0
    %v1817 = vadd.f32 %v1740, %v1816
    %1818 = vdwg.mxu0
    %1819 = vmatprep.subr.mxu0 0.0
    %1820 = vmatpush1.msra.mxu0 %v1685
    %1821 = vmatprep.subr.mxu0 0.0
    %1822 = vmatpush1.msra.mxu0 %v1688
    %1823 = vmatprep.subr.mxu0 0.0
    %1824 = vmatpush1.msra.mxu0 %v1691
    %1825 = vmatprep.subr.mxu0 0.0
    %1826 = vmatpush1.msra.mxu0 %v1694
    %1827 = vmatprep.subr.mxu0 0.0
    %1828 = vmatpush1.msra.mxu0 %v1697
    %1829 = vmatprep.subr.mxu0 0.0
    %1830 = vmatpush1.msra.mxu0 %v1700
    %1831 = vmatprep.subr.mxu0 0.0
    %1832 = vmatpush1.msra.mxu0 %v1703
    %1833 = vmatprep.subr.mxu0 0.0
    %1834 = vmatpush1.msra.mxu0 %v1706
    %1835 = vmatprep.subr.mxu0 0.0
    %1836 = vmatpush1.msra.mxu0 %v1709
    %1837 = vmatprep.subr.mxu0 0.0
    %1838 = vmatpush1.msra.mxu0 %v1712
    %1839 = vmatprep.subr.mxu0 0.0
    %1840 = vmatpush1.msra.mxu0 %v1715
    %1841 = vmatprep.subr.mxu0 0.0
    %1842 = vmatpush1.msra.mxu0 %v1718
    %1843 = vmatprep.subr.mxu0 0.0
    %1844 = vmatpush1.msra.mxu0 %v1721
    %1845 = vmatprep.subr.mxu0 0.0
    %1846 = vmatpush1.msra.mxu0 %v1724
    %1847 = vmatprep.subr.mxu0 0.0
    %1848 = vmatpush1.msra.mxu0 %v1727
    %1849 = vmatprep.subr.mxu0 0.0
    %1850 = vmatpush1.msra.mxu0 %v1730
    %1851 = vmatprep.subr.mxu0 0.0
    %1852 = vmatpush1.msra.mxu0 0.0
    %1853 = vmatprep.subr.mxu0 0.0
    %1854 = vmatpush1.msra.mxu0 0.0
    %1855 = vmatprep.subr.mxu0 0.0
    %1856 = vmatpush1.msra.mxu0 0.0
    %1857 = vmatprep.subr.mxu0 0.0
    %1858 = vmatpush1.msra.mxu0 0.0
    %1859 = vmatprep.subr.mxu0 0.0
    %1860 = vmatpush1.msra.mxu0 0.0
    %1861 = vmatprep.subr.mxu0 0.0
    %1862 = vmatpush1.msra.mxu0 0.0
    %1863 = vmatprep.subr.mxu0 0.0
    %1864 = vmatpush1.msra.mxu0 0.0
    %1865 = vmatprep.subr.mxu0 0.0
    %1866 = vmatpush1.msra.mxu0 0.0
    %1867 = vmatprep.subr.mxu0 0.0
    %1868 = vmatpush1.msra.mxu0 0.0
    %1869 = vmatprep.subr.mxu0 0.0
    %1870 = vmatpush1.msra.mxu0 0.0
    %1871 = vmatprep.subr.mxu0 0.0
    %1872 = vmatpush1.msra.mxu0 0.0
    %1873 = vmatprep.subr.mxu0 0.0
    %1874 = vmatpush1.msra.mxu0 0.0
    %1875 = vmatprep.subr.mxu0 0.0
    %1876 = vmatpush1.msra.mxu0 0.0
    %1877 = vmatprep.subr.mxu0 0.0
    %1878 = vmatpush1.msra.mxu0 0.0
    %1879 = vmatprep.subr.mxu0 0.0
    %1880 = vmatpush1.msra.mxu0 0.0
    %1881 = vmatprep.subr.mxu0 0.0
    %1882 = vmatpush1.msra.mxu0 0.0
    %1883 = vmatprep.mubr.f32.mxu0 0.0
    %1884 = vmatmul.mubr.f32.gmra.mrb[0].mxu0 %v1681
    %v1885 = vpop.f32.mrb[0].mxu0
    %v1886 = vadd.f32 %v1744, %v1885
    %v1887 = vpop.f32.mrb[0].mxu0
    %1888 = vdwg.mxu0
    %s1889 = scalar_lea.vmem [#allocation2], 6
    %v1890 = vld [vmem:[%s1889] ss:$8 sm:$0x7]
    %v1891 = vadd.f32 %v1890, %v1815
    %v1892 = vxor.u32 %v1891, 2147483648
    %v1893 = vmul.f32 %v1892, 1.442695
    %v1894 = vpow.pop %v1893
    %v1895 = vadd.f32 %v1894, 1.0
    %v1896 = vrcp.pop %v1895
    %v1897 = vmul.f32 1.0, %v1896
    %v1899 = vrot.slane %v1890, 1
    %v1901 = vadd.f32 %v1899, %v1817
    %v1902 = vxor.u32 %v1901, 2147483648
    %v1903 = vmul.f32 %v1902, 1.442695
    %v1904 = vpow.pop %v1903
    %v1905 = vadd.f32 %v1904, 1.0
    %v1906 = vrcp.pop %v1905
    %v1907 = vmul.f32 1.0, %v1906
    %v1908 = vmul.f32 %v1897, %v1886
    %v1909 = vrot.slane %v1890, 2
    %v1911 = vadd.f32 %v1909, %v1908
    %v1912 = vtanh.pop %v1911
    %v1913 = vsub.f32 1.0, %v1907
    %v1914 = vmul.f32 %v1913, %v1912
    %v1915 = vmul.f32 %v1907, %v1681
    %v1916 = vadd.f32 %v1914, %v1915
    %1917 = vst [vmem:[#allocation9 + $0x6] sm:$0x1] %v1916
    %v1918 = vld [vmem:[#allocation8] sm:$0xff]
    %v1919 = vld [vmem:[#allocation8 + $0x8] sm:$0xff]
    %v1920 = vld [vmem:[#allocation8 + $0x10] sm:$0xff]
    %v1921 = vld [vmem:[#allocation8 + $0x18] sm:$0xff]
    %v1922 = vld [vmem:[#allocation8 + $0x20] sm:$0xff]
    %v1923 = vld [vmem:[#allocation8 + $0x28] sm:$0xff]
    %v1924 = vld [vmem:[#allocation8 + $0x30] sm:$0xff]
    %v1925 = vld [vmem:[#allocation8 + $0x38] sm:$0xff]
    %v1926 = vld [vmem:[#allocation8 + $0x40] sm:$0xff]
    %v1927 = vld [vmem:[#allocation8 + $0x48] sm:$0xff]
    %v1928 = vld [vmem:[#allocation8 + $0x50] sm:$0xff]
    %v1929 = vld [vmem:[#allocation8 + $0x58] sm:$0xff]
    %v1930 = vld [vmem:[#allocation8 + $0x60] sm:$0xff]
    %v1931 = vld [vmem:[#allocation8 + $0x68] sm:$0xff]
    %v1932 = vld [vmem:[#allocation8 + $0x70] sm:$0xff]
    %v1933 = vld [vmem:[#allocation8 + $0x78] sm:$0xff]
    %v1934 = vld [vmem:[#allocation8 + $0x80] sm:$0xff]
    %v1935 = vld [vmem:[#allocation8 + $0x88] sm:$0xff]
    %v1936 = vld [vmem:[#allocation8 + $0x90] sm:$0xff]
    %v1937 = vld [vmem:[#allocation8 + $0x98] sm:$0xff]
    %v1938 = vld [vmem:[#allocation8 + $0xa0] sm:$0xff]
    %v1939 = vld [vmem:[#allocation8 + $0xa8] sm:$0xff]
    %v1940 = vld [vmem:[#allocation8 + $0xb0] sm:$0xff]
    %v1941 = vld [vmem:[#allocation8 + $0xb8] sm:$0xff]
    %v1942 = vld [vmem:[#allocation8 + $0xc0] sm:$0xff]
    %v1943 = vld [vmem:[#allocation8 + $0xc8] sm:$0xff]
    %v1944 = vld [vmem:[#allocation8 + $0xd0] sm:$0xff]
    %v1945 = vld [vmem:[#allocation8 + $0xd8] sm:$0xff]
    %v1946 = vld [vmem:[#allocation8 + $0xe0] sm:$0xff]
    %v1947 = vld [vmem:[#allocation8 + $0xe8] sm:$0xff]
    %v1948 = vld [vmem:[#allocation8 + $0xf0] sm:$0xff]
    %v1949 = vld [vmem:[#allocation8 + $0xf8] sm:$0xff]
    %v1950 = vld [vmem:[#allocation8 + $0x100] sm:$0xff]
    %v1951 = vld [vmem:[#allocation8 + $0x108] sm:$0xff]
    %v1952 = vld [vmem:[#allocation8 + $0x110] sm:$0xff]
    %v1953 = vld [vmem:[#allocation8 + $0x118] sm:$0xff]
    %v1954 = vld [vmem:[#allocation8 + $0x120] sm:$0xff]
    %v1955 = vld [vmem:[#allocation8 + $0x128] sm:$0xff]
    %v1956 = vld [vmem:[#allocation8 + $0x130] sm:$0xff]
    %v1957 = vld [vmem:[#allocation8 + $0x138] sm:$0xff]
    %v1958 = vld [vmem:[#allocation8 + $0x140] sm:$0xff]
    %v1959 = vld [vmem:[#allocation8 + $0x148] sm:$0xff]
    %v1960 = vld [vmem:[#allocation8 + $0x150] sm:$0xff]
    %v1961 = vld [vmem:[#allocation8 + $0x158] sm:$0xff]
    %v1962 = vld [vmem:[#allocation8 + $0x160] sm:$0xff]
    %v1963 = vld [vmem:[#allocation8 + $0x168] sm:$0xff]
    %v1964 = vld [vmem:[#allocation8 + $0x170] sm:$0xff]
    %v1965 = vld [vmem:[#allocation8 + $0x178] sm:$0xff]
    %v1966 = vld [vmem:[%s5] sm:$0x7]
    %v1968 = vlaneseq
    %v1969 = vshrl.u32 %v1968, 7
    %v1970 = vsub.s32 0, %v1969
    %v1971 = vrot.slane %v1966, %v1970
    %v1972 = vlaneseq
    %v1973 = vshrl.u32 %v1972, 7
    %v1974 = vsub.s32 1, %v1973
    %v1975 = vrot.slane %v1966, %v1974
    %v1976 = vlaneseq
    %v1977 = vshrl.u32 %v1976, 7
    %v1978 = vsub.s32 2, %v1977
    %v1979 = vrot.slane %v1966, %v1978
    %1983 = vmatprep.subr.mxu0 %v1919
    %1984 = vmatpush1.msra.mxu0 %v1918
    %1985 = vmatprep.subr.mxu0 %v1922
    %1986 = vmatpush1.msra.mxu0 %v1921
    %1987 = vmatprep.subr.mxu0 %v1925
    %1988 = vmatpush1.msra.mxu0 %v1924
    %1989 = vmatprep.subr.mxu0 %v1928
    %1990 = vmatpush1.msra.mxu0 %v1927
    %1991 = vmatprep.subr.mxu0 %v1931
    %1992 = vmatpush1.msra.mxu0 %v1930
    %1993 = vmatprep.subr.mxu0 %v1934
    %1994 = vmatpush1.msra.mxu0 %v1933
    %1995 = vmatprep.subr.mxu0 %v1937
    %1996 = vmatpush1.msra.mxu0 %v1936
    %1997 = vmatprep.subr.mxu0 %v1940
    %1998 = vmatpush1.msra.mxu0 %v1939
    %1999 = vmatprep.subr.mxu0 %v1943
    %2000 = vmatpush1.msra.mxu0 %v1942
    %2001 = vmatprep.subr.mxu0 %v1946
    %2002 = vmatpush1.msra.mxu0 %v1945
    %2003 = vmatprep.subr.mxu0 %v1949
    %2004 = vmatpush1.msra.mxu0 %v1948
    %2005 = vmatprep.subr.mxu0 %v1952
    %2006 = vmatpush1.msra.mxu0 %v1951
    %2007 = vmatprep.subr.mxu0 %v1955
    %2008 = vmatpush1.msra.mxu0 %v1954
    %2009 = vmatprep.subr.mxu0 %v1958
    %2010 = vmatpush1.msra.mxu0 %v1957
    %2011 = vmatprep.subr.mxu0 %v1961
    %2012 = vmatpush1.msra.mxu0 %v1960
    %2013 = vmatprep.subr.mxu0 %v1964
    %2014 = vmatpush1.msra.mxu0 %v1963
    %2015 = vmatprep.subr.mxu0 0.0
    %2016 = vmatpush1.msra.mxu0 0.0
    %2017 = vmatprep.subr.mxu0 0.0
    %2018 = vmatpush1.msra.mxu0 0.0
    %2019 = vmatprep.subr.mxu0 0.0
    %2020 = vmatpush1.msra.mxu0 0.0
    %2021 = vmatprep.subr.mxu0 0.0
    %2022 = vmatpush1.msra.mxu0 0.0
    %2023 = vmatprep.subr.mxu0 0.0
    %2024 = vmatpush1.msra.mxu0 0.0
    %2025 = vmatprep.subr.mxu0 0.0
    %2026 = vmatpush1.msra.mxu0 0.0
    %2027 = vmatprep.subr.mxu0 0.0
    %2028 = vmatpush1.msra.mxu0 0.0
    %2029 = vmatprep.subr.mxu0 0.0
    %2030 = vmatpush1.msra.mxu0 0.0
    %2031 = vmatprep.subr.mxu0 0.0
    %2032 = vmatpush1.msra.mxu0 0.0
    %2033 = vmatprep.subr.mxu0 0.0
    %2034 = vmatpush1.msra.mxu0 0.0
    %2035 = vmatprep.subr.mxu0 0.0
    %2036 = vmatpush1.msra.mxu0 0.0
    %2037 = vmatprep.subr.mxu0 0.0
    %2038 = vmatpush1.msra.mxu0 0.0
    %2039 = vmatprep.subr.mxu0 0.0
    %2040 = vmatpush1.msra.mxu0 0.0
    %2041 = vmatprep.subr.mxu0 0.0
    %2042 = vmatpush1.msra.mxu0 0.0
    %2043 = vmatprep.subr.mxu0 0.0
    %2044 = vmatpush1.msra.mxu0 0.0
    %2045 = vmatprep.subr.mxu0 0.0
    %2046 = vmatpush1.msra.mxu0 0.0
    %2047 = vmatprep.mubr.f32.mxu0 0.0
    %2048 = vmatmul.mubr.f32.gmra.mrb[0].mxu0 %v1916
    %v2049 = vpop.f32.mrb[0].mxu0
    %v2050 = vadd.f32 %v1971, %v2049
    %v2051 = vpop.f32.mrb[0].mxu0
    %v2052 = vadd.f32 %v1975, %v2051
    %2053 = vdwg.mxu0
    %2054 = vmatprep.subr.mxu0 0.0
    %2055 = vmatpush1.msra.mxu0 %v1920
    %2056 = vmatprep.subr.mxu0 0.0
    %2057 = vmatpush1.msra.mxu0 %v1923
    %2058 = vmatprep.subr.mxu0 0.0
    %2059 = vmatpush1.msra.mxu0 %v1926
    %2060 = vmatprep.subr.mxu0 0.0
    %2061 = vmatpush1.msra.mxu0 %v1929
    %2062 = vmatprep.subr.mxu0 0.0
    %2063 = vmatpush1.msra.mxu0 %v1932
    %2064 = vmatprep.subr.mxu0 0.0
    %2065 = vmatpush1.msra.mxu0 %v1935
    %2066 = vmatprep.subr.mxu0 0.0
    %2067 = vmatpush1.msra.mxu0 %v1938
    %2068 = vmatprep.subr.mxu0 0.0
    %2069 = vmatpush1.msra.mxu0 %v1941
    %2070 = vmatprep.subr.mxu0 0.0
    %2071 = vmatpush1.msra.mxu0 %v1944
    %2072 = vmatprep.subr.mxu0 0.0
    %2073 = vmatpush1.msra.mxu0 %v1947
    %2074 = vmatprep.subr.mxu0 0.0
    %2075 = vmatpush1.msra.mxu0 %v1950
    %2076 = vmatprep.subr.mxu0 0.0
    %2077 = vmatpush1.msra.mxu0 %v1953
    %2078 = vmatprep.subr.mxu0 0.0
    %2079 = vmatpush1.msra.mxu0 %v1956
    %2080 = vmatprep.subr.mxu0 0.0
    %2081 = vmatpush1.msra.mxu0 %v1959
    %2082 = vmatprep.subr.mxu0 0.0
    %2083 = vmatpush1.msra.mxu0 %v1962
    %2084 = vmatprep.subr.mxu0 0.0
    %2085 = vmatpush1.msra.mxu0 %v1965
    %2086 = vmatprep.subr.mxu0 0.0
    %2087 = vmatpush1.msra.mxu0 0.0
    %2088 = vmatprep.subr.mxu0 0.0
    %2089 = vmatpush1.msra.mxu0 0.0
    %2090 = vmatprep.subr.mxu0 0.0
    %2091 = vmatpush1.msra.mxu0 0.0
    %2092 = vmatprep.subr.mxu0 0.0
    %2093 = vmatpush1.msra.mxu0 0.0
    %2094 = vmatprep.subr.mxu0 0.0
    %2095 = vmatpush1.msra.mxu0 0.0
    %2096 = vmatprep.subr.mxu0 0.0
    %2097 = vmatpush1.msra.mxu0 0.0
    %2098 = vmatprep.subr.mxu0 0.0
    %2099 = vmatpush1.msra.mxu0 0.0
    %2100 = vmatprep.subr.mxu0 0.0
    %2101 = vmatpush1.msra.mxu0 0.0
    %2102 = vmatprep.subr.mxu0 0.0
    %2103 = vmatpush1.msra.mxu0 0.0
    %2104 = vmatprep.subr.mxu0 0.0
    %2105 = vmatpush1.msra.mxu0 0.0
    %2106 = vmatprep.subr.mxu0 0.0
    %2107 = vmatpush1.msra.mxu0 0.0
    %2108 = vmatprep.subr.mxu0 0.0
    %2109 = vmatpush1.msra.mxu0 0.0
    %2110 = vmatprep.subr.mxu0 0.0
    %2111 = vmatpush1.msra.mxu0 0.0
    %2112 = vmatprep.subr.mxu0 0.0
    %2113 = vmatpush1.msra.mxu0 0.0
    %2114 = vmatprep.subr.mxu0 0.0
    %2115 = vmatpush1.msra.mxu0 0.0
    %2116 = vmatprep.subr.mxu0 0.0
    %2117 = vmatpush1.msra.mxu0 0.0
    %2118 = vmatprep.mubr.f32.mxu0 0.0
    %2119 = vmatmul.mubr.f32.gmra.mrb[0].mxu0 %v1916
    %v2120 = vpop.f32.mrb[0].mxu0
    %v2121 = vadd.f32 %v1979, %v2120
    %v2122 = vpop.f32.mrb[0].mxu0
    %2123 = vdwg.mxu0
    %s2124 = scalar_lea.vmem [#allocation2], 7
    %v2125 = vld [vmem:[%s2124] ss:$8 sm:$0x7]
    %v2126 = vadd.f32 %v2125, %v2050
    %v2127 = vxor.u32 %v2126, 2147483648
    %v2128 = vmul.f32 %v2127, 1.442695
    %v2129 = vpow.pop %v2128
    %v2130 = vadd.f32 %v2129, 1.0
    %v2131 = vrcp.pop %v2130
    %v2132 = vmul.f32 1.0, %v2131
    %v2134 = vrot.slane %v2125, 1
    %v2136 = vadd.f32 %v2134, %v2052
    %v2137 = vxor.u32 %v2136, 2147483648
    %v2138 = vmul.f32 %v2137, 1.442695
    %v2139 = vpow.pop %v2138
    %v2140 = vadd.f32 %v2139, 1.0
    %v2141 = vrcp.pop %v2140
    %v2142 = vmul.f32 1.0, %v2141
    %v2143 = vmul.f32 %v2132, %v2121
    %v2144 = vrot.slane %v2125, 2
    %v2146 = vadd.f32 %v2144, %v2143
    %v2147 = vtanh.pop %v2146
    %v2148 = vsub.f32 1.0, %v2142
    %v2149 = vmul.f32 %v2148, %v2147
    %v2150 = vmul.f32 %v2142, %v1916
    %v2151 = vadd.f32 %v2149, %v2150
    %2152 = vst [vmem:[#allocation9 + $0x7] sm:$0x1] %v2151
    // Predicated region
    $region38: #{tpu_custom_call.1} parent=1 // pred_check
      _
    $region39: #{tpu_custom_call.1} parent=1 // pred_check_branch
      %2154 = sbr.rel (0) target = $region41
    $region40: #{tpu_custom_call.1} parent=1 // pred_region
      %s2156 = ssub.s32 128, 128
      %2157 = vsyncadd [#allocation5], %s2156
      %s2159 = sshll.u32 [#allocation9], 4
      %s2160 = int_to_ptr.vmem [resolvable:$true] %s2159
      %2162 = dma.vmem_to_hbm [thread:$0]  %s2160, 128, %s6, [#allocation5]
    $region41: #{tpu_custom_call.1} parent=1 // pred_fallthru
      _
    // Predicated region
    $region42: #{tpu_custom_call.1} parent=1 // pred_check
      _
    $region43: #{tpu_custom_call.1} parent=1 // pred_check_branch
      %2164 = sbr.rel (0) target = $region45
    $region44: #{tpu_custom_call.1} parent=1 // pred_region
      %2165 = dma.done [#allocation5], 128
    $region45: #{tpu_custom_call.1} parent=1 // pred_fallthru
      _
    %2166 = vsyncpa [#allocation4], 1
    %2167 = vsyncpa [#allocation7], 1
    %2168 = vsyncpa [#allocation5], 1

</llo_original>
